<compile_context>
chip_gen: v6e
topology: v6e:2x2x1
jax: 0.10.0
libtpu: 0.0.40
codegen_flags: <defaults>
</compile_context>

<pallas_src>
import functools

import jax
import jax.numpy as jnp
from jax.experimental import pallas as pl
from jax.experimental.pallas import tpu as pltpu

EPS = 1e-6


# ----------------------------------------------------------------------------
# Generation-aware budgets (v5e/v6e: 128 MiB VMEM, v7x: 64 MiB per TC).
# ----------------------------------------------------------------------------
def _vmem_capacity_bytes():
    try:
        info = pltpu.get_tpu_info()
        for attr in ("vmem_capacity_bytes", "vmem_size_bytes", "vmem_bytes"):
            v = getattr(info, attr, None)
            if v:
                return int(v)
    except Exception:
        pass
    return 64 * 1024 * 1024            # assume the smallest (v7x) when unknown


_VMEM_CAP = _vmem_capacity_bytes()
_BIG_VMEM = _VMEM_CAP >= 96 * 1024 * 1024
_VMEM_LIMIT = min(int(_VMEM_CAP * 0.8), 100 * 1024 * 1024)
_ROW_CAP = 1024 if _BIG_VMEM else 512       # projection row tile cap
_TQ_CAP = 512 if _BIG_VMEM else 256         # attention query tile cap


def _row_tile(T, cap):
    """Largest multiple-of-8 divisor of T <= cap, preferring >= 2 grid steps
    (v7x has 2 TensorCores)."""
    if T % 8 != 0 or T <= 8:
        return T
    limit = max(8, min(cap, T // 2))
    tm, t = 8, 8
    while t <= limit:
        if T % t == 0:
            tm = t
        t += 8
    return tm


def _q_tile(N, cap):
    if N % 8 != 0 or N <= 8:
        return N
    tq, t = 8, 8
    limit = min(cap, N)
    while t <= limit:
        if N % t == 0:
            tq = t
        t += 8
    return tq


# ----------------------------------------------------------------------------
# Kernel 1: fused RMS-norm(x) @ [u|q] and @ [v|k] -> silu, two lane-dense slabs
# ----------------------------------------------------------------------------
def _proj_kernel(x_ref, wuq_ref, wvk_ref, uq_ref, vk_ref):
    x = x_ref[...].astype(jnp.float32)
    nx = (x * jax.lax.rsqrt(jnp.mean(x * x, axis=-1, keepdims=True) + EPS)
          ).astype(jnp.bfloat16)
    uq_ref[...] = jax.nn.silu(
        jnp.dot(nx, wuq_ref[...], preferred_element_type=jnp.float32)
    ).astype(uq_ref.dtype)
    vk_ref[...] = jax.nn.silu(
        jnp.dot(nx, wvk_ref[...], preferred_element_type=jnp.float32)
    ).astype(vk_ref.dtype)


def rms_uvqk_proj(x, w_uq, w_vk):
    T, D = x.shape
    Puq, Pvk = w_uq.shape[1], w_vk.shape[1]
    tm = _row_tile(T, _ROW_CAP)
    return pl.pallas_call(
        _proj_kernel,
        out_shape=(jax.ShapeDtypeStruct((T, Puq), jnp.bfloat16),
                   jax.ShapeDtypeStruct((T, Pvk), jnp.bfloat16)),
        grid=(pl.cdiv(T, tm),),
        in_specs=[pl.BlockSpec((tm, D), lambda i: (i, 0)),
                  pl.BlockSpec((D, Puq), lambda i: (0, 0)),     # resident
                  pl.BlockSpec((D, Pvk), lambda i: (0, 0))],    # resident
        out_specs=(pl.BlockSpec((tm, Puq), lambda i: (i, 0)),
                   pl.BlockSpec((tm, Pvk), lambda i: (i, 0))),
        compiler_params=pltpu.CompilerParams(
            dimension_semantics=("parallel",),
            vmem_limit_bytes=_VMEM_LIMIT),
        cost_estimate=pl.CostEstimate(
            flops=2 * T * D * (Puq + Pvk),
            transcendentals=T * (Puq + Pvk),
            bytes_accessed=2 * (T * D + D * (Puq + Pvk) + T * (Puq + Pvk))),
    )(x, w_uq, w_vk)


# ----------------------------------------------------------------------------
# Kernel 2 (fused): multichannel attention + u*rms_norm + lin0 + residual + FFN
# ----------------------------------------------------------------------------
def _attn_mffn_kernel(uq_ref, vk_ref, pos_ref, bkt_ref, mask_ref, ts_tab_ref,
                      x0_ref, valid_ref, w0_ref, b0_ref, w1_ref, w3_ref,
                      w2_ref, o_ref, *, H, A, L, n, num_buckets):
    HL = H * L
    D3 = 3 * HL

    mask = mask_ref[...].astype(jnp.float32)                  # (tq, N)

    # key/value for the whole (padded) sequence of this batch element
    v = vk_ref[0, :, :HL]                                     # (N, HL)  bf16
    k = vk_ref[0, :, HL:]                                     # (N, HA)  bf16
    q = uq_ref[0, :, D3:]                                     # (tq, HA) bf16
    u = uq_ref[0, :, :D3].astype(jnp.float32)                 # (tq, 3HL) f32

    # ---- relative-position bias channel (pos * mask folded in wrapper) ----
    pos_out = jnp.dot(pos_ref[...], v,
                      preferred_element_type=jnp.float32)     # (tq, HL)

    # ---- timestamp-bucket bias channel: select against the SMEM table -----
    bkt = bkt_ref[0]                                          # (tq, N) int32
    ts = jnp.full(bkt.shape, ts_tab_ref[0], dtype=jnp.float32)
    for j in range(1, num_buckets):
        ts = jnp.where(bkt == j, ts_tab_ref[j], ts)
    ts = ts * mask
    ts_out = jnp.dot(ts.astype(jnp.bfloat16), v,
                     preferred_element_type=jnp.float32)      # (tq, HL)

    # ---- ams @ lin0, decomposed per channel.  rms_norm over the full 3HL
    # attention row factors into a per-row scalar applied after the matmul:
    #   (u * attn * scale) @ W0 == scale * ((u * attn) @ W0)
    ss = (jnp.sum(pos_out * pos_out, axis=-1, keepdims=True)
          + jnp.sum(ts_out * ts_out, axis=-1, keepdims=True))
    x_acc = jnp.dot((u[:, :HL] * pos_out).astype(jnp.bfloat16),
                    w0_ref[:HL, :], preferred_element_type=jnp.float32)
    x_acc = x_acc + jnp.dot((u[:, HL:2 * HL] * ts_out).astype(jnp.bfloat16),
                            w0_ref[HL:2 * HL, :],
                            preferred_element_type=jnp.float32)

    # ---- latent attention channel (reference scales by 1 / padded length n)
    inv_n = 1.0 / float(n)
    for h in range(H):
        s = jax.lax.dot_general(q[:, h * A:(h + 1) * A],
                                k[:, h * A:(h + 1) * A],
                                (((1,), (1,)), ((), ())),
                                preferred_element_type=jnp.float32)   # (tq, N)
        s = jax.nn.silu(s) * inv_n * mask
        lat = jnp.dot(s.astype(jnp.bfloat16), v[:, h * L:(h + 1) * L],
                      preferred_element_type=jnp.float32)             # (tq, L)
        ss = ss + jnp.sum(lat * lat, axis=-1, keepdims=True)
        c0 = 2 * HL + h * L
        x_acc = x_acc + jnp.dot((u[:, c0:c0 + L] * lat).astype(jnp.bfloat16),
                                w0_ref[c0:c0 + L, :],
                                preferred_element_type=jnp.float32)

    scale = jax.lax.rsqrt(ss * (1.0 / float(D3)) + EPS)       # rms over 3HL
    X = (scale * x_acc + b0_ref[...].astype(jnp.float32)
         + x0_ref[0].astype(jnp.float32))                     # lin0 + residual

    # ---- two-stage FFN (ffn_single_stage=False; dropout=identity in eval) --
    nX = (X * jax.lax.rsqrt(jnp.mean(X * X, axis=-1, keepdims=True) + EPS)
          ).astype(jnp.bfloat16)
    h1 = jnp.dot(nX, w1_ref[...], preferred_element_type=jnp.float32)
    h3 = jnp.dot(nX, w3_ref[...], preferred_element_type=jnp.float32)
    X1 = (jax.nn.silu(h1) * h3).astype(jnp.bfloat16)
    out = jnp.dot(X1, w2_ref[...], preferred_element_type=jnp.float32) + X

    # dense_to_jagged semantics: padded rows stay exactly zero for next layer
    o_ref[0] = (out * valid_ref[0].astype(jnp.float32)).astype(o_ref.dtype)


def attn_mffn(uq, vk, pos_masked, bucket, mask, ts_table, x0, valid,
              w0, b0, w1, w3, w2, *, H, A, L, num_buckets):
    B, N, Puq = uq.shape
    Pvk = vk.shape[-1]
    D = x0.shape[-1]
    Dh = w1.shape[1]
    HL, HA = H * L, H * A
    D3 = 3 * HL
    tq = _q_tile(N, _TQ_CAP)
    QT = pl.cdiv(N, tq)
    kern = functools.partial(_attn_mffn_kernel, H=H, A=A, L=L, n=N,
                             num_buckets=num_buckets)

    flops = B * (2 * N * N * (HA + 3 * HL)
                 + 2 * N * D3 * D + 4 * N * D * Dh + 2 * N * Dh * D)
    transc = B * N * (N * H + 2 * Dh + 4)
    bytes_accessed = int(B * N * (Puq + Pvk) * 2 + B * N * N * 4
                         + N * N * 4 + B * N * D * 4
                         + (D3 * D + 2 * D * Dh + Dh * D) * 2)

    # Batch is the innermost grid axis so the batch-invariant pos/mask blocks
    # stay resident across it (DMA'd once per query tile, not once per batch).
    # TODO(synk): for very large D/Dh the resident MFFN weights should be
    # replaced by a K-tiled reduction axis (P3 accumulator pattern).
    return pl.pallas_call(
        kern,
        out_shape=jax.ShapeDtypeStruct((B, N, D), jnp.bfloat16),
        grid=(QT, B),
        in_specs=[
            pl.BlockSpec((1, tq, Puq), lambda qi, b: (b, qi, 0)),   # [u|q]
            pl.BlockSpec((1, N, Pvk), lambda qi, b: (b, 0, 0)),     # [v|k]
            pl.BlockSpec((tq, N), lambda qi, b: (qi, 0)),           # pos*mask
            pl.BlockSpec((1, tq, N), lambda qi, b: (b, qi, 0)),     # ts bucket
            pl.BlockSpec((tq, N), lambda qi, b: (qi, 0)),           # mask
            pl.BlockSpec(memory_space=pltpu.MemorySpace.SMEM),      # ts table
            pl.BlockSpec((1, tq, D), lambda qi, b: (b, qi, 0)),     # x0
            pl.BlockSpec((1, tq, 1), lambda qi, b: (b, qi, 0)),     # valid
            pl.BlockSpec((D3, D), lambda qi, b: (0, 0)),            # lin0 w
            pl.BlockSpec((1, D), lambda qi, b: (0, 0)),             # lin0 b
            pl.BlockSpec((D, Dh), lambda qi, b: (0, 0)),            # lin1 w
            pl.BlockSpec((D, Dh), lambda qi, b: (0, 0)),            # lin3 w
            pl.BlockSpec((Dh, D), lambda qi, b: (0, 0)),            # lin2 w
        ],
        out_specs=pl.BlockSpec((1, tq, D), lambda qi, b: (b, qi, 0)),
        compiler_params=pltpu.CompilerParams(
            dimension_semantics=("parallel", "parallel"),
            vmem_limit_bytes=_VMEM_LIMIT),
        cost_estimate=pl.CostEstimate(
            flops=flops, transcendentals=transc,
            bytes_accessed=bytes_accessed),
    )(uq, vk, pos_masked, bucket, mask, ts_table, x0, valid,
      w0, b0, w1, w3, w2)


# ----------------------------------------------------------------------------
# Glue: relative attention bias indices, block forward, stacked forward
# ----------------------------------------------------------------------------
def _make_rel_indices(all_timestamps, N, num_ts_buckets):
    # TODO(synk): RelativeAttentionBiasModule is not defined in the reference
    # source; a synthetic (relative-position table + bucketized timestamp-delta
    # table) bias is used.  Layer-invariant index math hoisted out of the loop.
    idx = jnp.arange(N)
    rel = idx[:, None] - idx[None, :] + N - 1                     # (N, N)
    ts = all_timestamps[:, :N].astype(jnp.float32)  # TODO(synk): maybe [:, 1:]
    dt = jnp.abs(ts[:, :, None] - ts[:, None, :])
    bucket = jnp.clip(jnp.floor(jnp.log1p(dt)).astype(jnp.int32),
                      0, num_ts_buckets - 1)                      # (B, N, N)
    return rel, bucket


def fuxi_block_forward(params, x, valid, pos_rel, bucket, mask,
                       H, A, L, num_buckets):
    B, N, D = x.shape
    # fused rms_norm + uvqk projection + silu -> [u|q] and [v|k] bf16 slabs
    uq, vk = rms_uvqk_proj(x.reshape(B * N, D), params["w_uq"], params["w_vk"])
    # pos bias * mask is batch- and query-tile-invariant -> fold once per layer
    pos_masked = (params["pos_table"][pos_rel]
                  * mask.astype(jnp.float32)).astype(jnp.bfloat16)    # (N, N)
    return attn_mffn(uq.reshape(B, N, -1), vk.reshape(B, N, -1),
                     pos_masked, bucket, mask, params["ts_table"], x, valid,
                     params["lin0_w"], params["lin0_b"], params["lin1_w"],
                     params["lin3_w"], params["lin2_w"],
                     H=H, A=A, L=L, num_buckets=num_buckets)


def fuxi_jagged_forward(layer_params, x, x_offsets, all_timestamps,
                        invalid_attn_mask, H, A, L, num_ts_buckets=16):
    B, N, D = x.shape
    lengths = x_offsets[1:] - x_offsets[:-1]
    valid = (jnp.arange(N)[None, :] < lengths[:, None])
    valid3 = valid[:, :, None].astype(jnp.float32)                 # (B, N, 1)
    # dense_to_jagged emulation: padded rows forced to zero.  The inter-layer
    # activation stream is bf16; norms / residual adds stay f32 in-kernel.
    xs = (x.astype(jnp.float32) * valid3).astype(jnp.bfloat16)
    rel, bucket = _make_rel_indices(all_timestamps, N, num_ts_buckets)
    mask = invalid_attn_mask.astype(jnp.bfloat16)
    for params in layer_params:
        xs = fuxi_block_forward(params, xs, valid3, rel, bucket, mask,
                                H, A, L, num_ts_buckets)
    # final jagged_to_padded_dense: padded rows are already zero
    return xs.astype(jnp.float32)


# ----------------------------------------------------------------------------
# Parameter init (reference ordering) + kernel-layout preparation
# ----------------------------------------------------------------------------
def _attn_perm(H, L):
    """Map kernel attention column (channel-major: [pos|ts|lat] slabs) to the
    reference column (head-major: per-head [pos, ts, lat])."""
    perm = []
    for channel in range(3):
        for h in range(H):
            for l in range(L):
                perm.append(h * 3 * L + channel * L + l)
    return jnp.asarray(perm, jnp.int32)


def init_block_params(key, D, L, A, H, N, num_ts_buckets=16, ffn_multiply=1.0):
    Dh = int(D * ffn_multiply)
    P = L * H * 4 + A * H * 2
    D3 = 3 * L * H
    ks = jax.random.split(key, 8)

    def xavier(k, shape):
        fan_in, fan_out = shape
        lim = (6.0 / (fan_in + fan_out)) ** 0.5
        return jax.random.uniform(k, shape, jnp.float32, -lim, lim)

    return dict(
        uvqk=0.02 * jax.random.normal(ks[0], (D, P), jnp.float32),
        lin0_w=xavier(ks[1], (D3, D)),
        lin0_b=jax.random.uniform(ks[2], (1, D), jnp.float32, -1.0, 1.0)
               / (D3 ** 0.5),
        lin1_w=xavier(ks[3], (D, Dh)),
        lin3_w=xavier(ks[4], (D, Dh)),
        lin2_w=xavier(ks[5], (Dh, D)),
        pos_table=0.02 * jax.random.normal(ks[6], (2 * N - 1,), jnp.float32),
        ts_table=0.02 * jax.random.normal(ks[7], (num_ts_buckets,),
                                          jnp.float32),
    )


def prepare_block_params(p, H, L, A):
    """One-time, numerically-free transform: permute the u-slab of uvqk and the
    rows of lin0_w to the kernel's channel-major attention layout, regroup the
    uvqk columns into the [u|q] / [v|k] output slabs, and cast matmul weights
    to bf16 (f32 accumulation happens in-kernel)."""
    HL = H * L
    HL3 = 3 * HL
    HA = H * A
    perm = _attn_perm(H, L)
    uvqk = p["uvqk"]
    u_w = uvqk[:, :HL3][:, perm]                   # channel-major u columns
    v_w = uvqk[:, HL3:HL3 + HL]
    q_w = uvqk[:, HL3 + HL:HL3 + HL + HA]
    k_w = uvqk[:, HL3 + HL + HA:]
    return dict(
        w_uq=jnp.concatenate([u_w, q_w], axis=1).astype(jnp.bfloat16),
        w_vk=jnp.concatenate([v_w, k_w], axis=1).astype(jnp.bfloat16),
        lin0_w=p["lin0_w"][perm, :].astype(jnp.bfloat16),
        lin0_b=p["lin0_b"].astype(jnp.float32),
        lin1_w=p["lin1_w"].astype(jnp.bfloat16),
        lin3_w=p["lin3_w"].astype(jnp.bfloat16),
        lin2_w=p["lin2_w"].astype(jnp.bfloat16),
        pos_table=p["pos_table"].astype(jnp.float32),
        ts_table=p["ts_table"].astype(jnp.float32),
    )


if __name__ == "__main__":
    B, N, D = 2, 8, 32
    H, A, L = 2, 16, 16
    num_layers = 2
    num_ts_buckets = 16

    key = jax.random.PRNGKey(0)
    kx, kt, k1, k2 = jax.random.split(key, 4)

    x = jax.random.normal(kx, (B, N, D), jnp.float32)
    lengths = jnp.array([5, 8], jnp.int32)
    x_offsets = jnp.concatenate(
        [jnp.zeros((1,), jnp.int32), jnp.cumsum(lengths)]).astype(jnp.int32)
    all_timestamps = jnp.cumsum(
        jax.random.randint(kt, (B, 1 + N), 1, 100, jnp.int32), axis=1)
    invalid_attn_mask = jnp.tril(jnp.ones((N, N), jnp.float32))

    raw_params = [init_block_params(k, D, L, A, H, N,
                                    num_ts_buckets=num_ts_buckets)
                  for k in (k1, k2)]
    layer_params = [prepare_block_params(p, H, L, A) for p in raw_params]

    fwd = jax.jit(functools.partial(fuxi_jagged_forward, H=H, A=A, L=L,
                                    num_ts_buckets=num_ts_buckets))
    y = fwd(layer_params, x, x_offsets, all_timestamps, invalid_attn_mask)
    jax.block_until_ready(y)
    assert y.shape == (B, N, D)
    print("KERNEL_OK")
</pallas_src>

<mosaic_0001>
module attributes {stable_mosaic.version = 11 : i64} {
  func.func @_proj_kernel(%arg0: i32, %arg1: memref<8x32xbf16, #tpu.memory_space<vmem>>, %arg2: memref<32x128xbf16, #tpu.memory_space<vmem>>, %arg3: memref<32x64xbf16, #tpu.memory_space<vmem>>, %arg4: memref<8x128xbf16, #tpu.memory_space<vmem>>, %arg5: memref<8x64xbf16, #tpu.memory_space<vmem>>) attributes {dimension_semantics = [#tpu.dimension_semantics<parallel>], iteration_bounds = array<i64: 2>, scalar_prefetch = 0 : i64, scratch_operands = 0 : i64, tpu.core_type = #tpu.core_type<tc>, window_params = [{transform_indices = @transform_0, window_bounds = array<i64: 8, 32>}, {pipeline_mode = #tpu.pipeline_mode<synchronous>, transform_indices = @transform_1, window_bounds = array<i64: 32, 128>}, {pipeline_mode = #tpu.pipeline_mode<synchronous>, transform_indices = @transform_2, window_bounds = array<i64: 32, 64>}, {transform_indices = @transform_3, window_bounds = array<i64: 8, 128>}, {transform_indices = @transform_4, window_bounds = array<i64: 8, 64>}]} {
    %c0 = arith.constant 0 : index
    %c0_0 = arith.constant 0 : index
    %0 = vector.load %arg1[%c0, %c0_0] : memref<8x32xbf16, #tpu.memory_space<vmem>>, vector<8x32xbf16>
    %1 = arith.extf %0 : vector<8x32xbf16> to vector<8x32xf32>
    %2 = arith.mulf %1, %1 : vector<8x32xf32>
    %cst = arith.constant dense<0.000000e+00> : vector<8xf32>
    %3 = vector.multi_reduction <add>, %2, %cst [1] : vector<8x32xf32> to vector<8xf32>
    %4 = vector.shape_cast %3 : vector<8xf32> to vector<8x1xf32>
    %cst_1 = arith.constant 3.200000e+01 : f32
    %5 = vector.broadcast %cst_1 : f32 to vector<8x1xf32>
    %6 = arith.divf %4, %5 : vector<8x1xf32>
    %cst_2 = arith.constant 9.99999997E-7 : f32
    %7 = vector.broadcast %cst_2 : f32 to vector<8x1xf32>
    %8 = arith.addf %6, %7 : vector<8x1xf32>
    %9 = math.rsqrt %8 : vector<8x1xf32>
    %10 = vector.broadcast %9 : vector<8x1xf32> to vector<8x32xf32>
    %11 = arith.mulf %1, %10 : vector<8x32xf32>
    %12 = arith.truncf %11 : vector<8x32xf32> to vector<8x32xbf16>
    %c0_3 = arith.constant 0 : index
    %c0_4 = arith.constant 0 : index
    %13 = vector.load %arg2[%c0_3, %c0_4] : memref<32x128xbf16, #tpu.memory_space<vmem>>, vector<32x128xbf16>
    %cst_5 = arith.constant dense<0.000000e+00> : vector<8x128xf32>
    %14 = tpu.matmul %12, %13, %cst_5 {dimension_numbers = #tpu.dot_dimension_numbers<[1], [0], [0], [1], [0, 0, 1, 1], [], []>} : vector<8x32xbf16>, vector<32x128xbf16>, vector<8x128xf32> -> vector<8x128xf32>
    %15 = arith.negf %14 : vector<8x128xf32>
    %16 = math.exp %15 : vector<8x128xf32>
    %cst_6 = arith.constant 1.000000e+00 : f32
    %17 = vector.broadcast %cst_6 : f32 to vector<8x128xf32>
    %18 = arith.addf %17, %16 : vector<8x128xf32>
    %19 = arith.divf %17, %18 : vector<8x128xf32>
    %20 = arith.mulf %14, %19 : vector<8x128xf32>
    %21 = arith.truncf %20 : vector<8x128xf32> to vector<8x128xbf16>
    %c0_7 = arith.constant 0 : index
    %c0_8 = arith.constant 0 : index
    %22 = vector.load %arg4[%c0_7, %c0_8] : memref<8x128xbf16, #tpu.memory_space<vmem>>, vector<8x128xbf16>
    tpu.vector_store %arg4[%c0_7, %c0_8], %21 {strides = array<i32>} : memref<8x128xbf16, #tpu.memory_space<vmem>>, vector<8x128xbf16>,
    %c0_9 = arith.constant 0 : index
    %c0_10 = arith.constant 0 : index
    %23 = vector.load %arg3[%c0_9, %c0_10] : memref<32x64xbf16, #tpu.memory_space<vmem>>, vector<32x64xbf16>
    %cst_11 = arith.constant dense<0.000000e+00> : vector<8x64xf32>
    %24 = tpu.matmul %12, %23, %cst_11 {dimension_numbers = #tpu.dot_dimension_numbers<[1], [0], [0], [1], [0, 0, 1, 1], [], []>} : vector<8x32xbf16>, vector<32x64xbf16>, vector<8x64xf32> -> vector<8x64xf32>
    %25 = arith.negf %24 : vector<8x64xf32>
    %26 = math.exp %25 : vector<8x64xf32>
    %cst_12 = arith.constant 1.000000e+00 : f32
    %27 = vector.broadcast %cst_12 : f32 to vector<8x64xf32>
    %28 = arith.addf %27, %26 : vector<8x64xf32>
    %29 = arith.divf %27, %28 : vector<8x64xf32>
    %30 = arith.mulf %24, %29 : vector<8x64xf32>
    %31 = arith.truncf %30 : vector<8x64xf32> to vector<8x64xbf16>
    %c0_13 = arith.constant 0 : index
    %c0_14 = arith.constant 0 : index
    %32 = vector.load %arg5[%c0_13, %c0_14] : memref<8x64xbf16, #tpu.memory_space<vmem>>, vector<8x64xbf16>
    tpu.vector_store %arg5[%c0_13, %c0_14], %31 {strides = array<i32>} : memref<8x64xbf16, #tpu.memory_space<vmem>>, vector<8x64xbf16>,
    return
  }
  func.func @transform_0(%arg0: i32) -> (i32, i32) {
    %c0_i32 = arith.constant 0 : i32
    %c0_i32_0 = arith.constant 0 : i32
    return %arg0, %c0_i32 : i32, i32
  }
  func.func @transform_1(%arg0: i32) -> (i32, i32) {
    %c0_i32 = arith.constant 0 : i32
    %c0_i32_0 = arith.constant 0 : i32
    %c0_i32_1 = arith.constant 0 : i32
    return %c0_i32, %c0_i32_0 : i32, i32
  }
  func.func @transform_2(%arg0: i32) -> (i32, i32) {
    %c0_i32 = arith.constant 0 : i32
    %c0_i32_0 = arith.constant 0 : i32
    %c0_i32_1 = arith.constant 0 : i32
    return %c0_i32, %c0_i32_0 : i32, i32
  }
  func.func @transform_3(%arg0: i32) -> (i32, i32) {
    %c0_i32 = arith.constant 0 : i32
    %c0_i32_0 = arith.constant 0 : i32
    return %arg0, %c0_i32 : i32, i32
  }
  func.func @transform_4(%arg0: i32) -> (i32, i32) {
    %c0_i32 = arith.constant 0 : i32
    %c0_i32_0 = arith.constant 0 : i32
    return %arg0, %c0_i32 : i32, i32
  }
}

module attributes {stable_mosaic.version = 11 : i64} {
  func.func @_attn_mffn_kernel(%arg0: i32, %arg1: i32, %arg2: memref<1x8x128xbf16, #tpu.memory_space<vmem>>, %arg3: memref<1x8x64xbf16, #tpu.memory_space<vmem>>, %arg4: memref<8x8xbf16, #tpu.memory_space<vmem>>, %arg5: memref<1x8x8xi32, #tpu.memory_space<vmem>>, %arg6: memref<8x8xbf16, #tpu.memory_space<vmem>>, %arg7: memref<16xf32, #tpu.memory_space<smem>>, %arg8: memref<1x8x32xbf16, #tpu.memory_space<vmem>>, %arg9: memref<1x8x1xf32, #tpu.memory_space<vmem>>, %arg10: memref<96x32xbf16, #tpu.memory_space<vmem>>, %arg11: memref<1x32xf32, #tpu.memory_space<vmem>>, %arg12: memref<32x32xbf16, #tpu.memory_space<vmem>>, %arg13: memref<32x32xbf16, #tpu.memory_space<vmem>>, %arg14: memref<32x32xbf16, #tpu.memory_space<vmem>>, %arg15: memref<1x8x32xbf16, #tpu.memory_space<vmem>>) attributes {dimension_semantics = [#tpu.dimension_semantics<parallel>, #tpu.dimension_semantics<parallel>], iteration_bounds = array<i64: 1, 2>, scalar_prefetch = 0 : i64, scratch_operands = 0 : i64, tpu.core_type = #tpu.core_type<tc>, window_params = [{transform_indices = @transform_0, window_bounds = array<i64: 1, 8, 128>}, {transform_indices = @transform_1, window_bounds = array<i64: 1, 8, 64>}, {transform_indices = @transform_2, window_bounds = array<i64: 8, 8>}, {transform_indices = @transform_3, window_bounds = array<i64: 1, 8, 8>}, {transform_indices = @transform_4, window_bounds = array<i64: 8, 8>}, {transform_indices = @transform_5, window_bounds = array<i64: 16>}, {transform_indices = @transform_6, window_bounds = array<i64: 1, 8, 32>}, {transform_indices = @transform_7, window_bounds = array<i64: 1, 8, 1>}, {pipeline_mode = #tpu.pipeline_mode<synchronous>, transform_indices = @transform_8, window_bounds = array<i64: 96, 32>}, {pipeline_mode = #tpu.pipeline_mode<synchronous>, transform_indices = @transform_9, window_bounds = array<i64: 1, 32>}, {pipeline_mode = #tpu.pipeline_mode<synchronous>, transform_indices = @transform_10, window_bounds = array<i64: 32, 32>}, {pipeline_mode = #tpu.pipeline_mode<synchronous>, transform_indices = @transform_11, window_bounds = array<i64: 32, 32>}, {pipeline_mode = #tpu.pipeline_mode<synchronous>, transform_indices = @transform_12, window_bounds = array<i64: 32, 32>}, {transform_indices = @transform_13, window_bounds = array<i64: 1, 8, 32>}]} {
    %c0 = arith.constant 0 : index
    %c0_0 = arith.constant 0 : index
    %0 = vector.load %arg6[%c0, %c0_0] : memref<8x8xbf16, #tpu.memory_space<vmem>>, vector<8x8xbf16>
    %1 = arith.extf %0 : vector<8x8xbf16> to vector<8x8xf32>
    %c0_1 = arith.constant 0 : index
    %c0_2 = arith.constant 0 : index
    %c0_3 = arith.constant 0 : index
    %2 = vector.load %arg3[%c0_1, %c0_2, %c0_3] : memref<1x8x64xbf16, #tpu.memory_space<vmem>>, vector<1x8x32xbf16>
    %3 = vector.shape_cast %2 : vector<1x8x32xbf16> to vector<8x32xbf16>
    %c0_4 = arith.constant 0 : index
    %c0_5 = arith.constant 0 : index
    %c32 = arith.constant 32 : index
    %4 = vector.load %arg3[%c0_4, %c0_5, %c32] : memref<1x8x64xbf16, #tpu.memory_space<vmem>>, vector<1x8x32xbf16>
    %5 = vector.shape_cast %4 : vector<1x8x32xbf16> to vector<8x32xbf16>
    %c0_6 = arith.constant 0 : index
    %c0_7 = arith.constant 0 : index
    %c96 = arith.constant 96 : index
    %6 = vector.load %arg2[%c0_6, %c0_7, %c96] : memref<1x8x128xbf16, #tpu.memory_space<vmem>>, vector<1x8x32xbf16>
    %7 = vector.shape_cast %6 : vector<1x8x32xbf16> to vector<8x32xbf16>
    %c0_8 = arith.constant 0 : index
    %c0_9 = arith.constant 0 : index
    %c0_10 = arith.constant 0 : index
    %8 = vector.load %arg2[%c0_8, %c0_9, %c0_10] : memref<1x8x128xbf16, #tpu.memory_space<vmem>>, vector<1x8x96xbf16>
    %9 = vector.shape_cast %8 : vector<1x8x96xbf16> to vector<8x96xbf16>
    %10 = arith.extf %9 : vector<8x96xbf16> to vector<8x96xf32>
    %c0_11 = arith.constant 0 : index
    %c0_12 = arith.constant 0 : index
    %11 = vector.load %arg4[%c0_11, %c0_12] : memref<8x8xbf16, #tpu.memory_space<vmem>>, vector<8x8xbf16>
    %cst = arith.constant dense<0.000000e+00> : vector<8x32xf32>
    %12 = tpu.matmul %11, %3, %cst {dimension_numbers = #tpu.dot_dimension_numbers<[1], [0], [0], [1], [0, 0, 1, 1], [], []>} : vector<8x8xbf16>, vector<8x32xbf16>, vector<8x32xf32> -> vector<8x32xf32>
    %c0_13 = arith.constant 0 : index
    %c0_14 = arith.constant 0 : index
    %c0_15 = arith.constant 0 : index
    %13 = vector.load %arg5[%c0_13, %c0_14, %c0_15] : memref<1x8x8xi32, #tpu.memory_space<vmem>>, vector<1x8x8xi32>
    %14 = vector.shape_cast %13 : vector<1x8x8xi32> to vector<8x8xi32>
    %c0_16 = arith.constant 0 : index
    %15 = memref.load %arg7[%c0_16] : memref<16xf32, #tpu.memory_space<smem>>
    %16 = vector.broadcast %15 : f32 to vector<8x8xf32>
    %c1_i32 = arith.constant 1 : i32
    %17 = vector.broadcast %c1_i32 : i32 to vector<8x8xi32>
    %18 = arith.cmpi eq, %14, %17 : vector<8x8xi32>
    %c1 = arith.constant 1 : index
    %19 = memref.load %arg7[%c1] : memref<16xf32, #tpu.memory_space<smem>>
    %20 = vector.broadcast %19 : f32 to vector<8x8xf32>
    %21 = arith.select %18, %20, %16 : vector<8x8xi1>, vector<8x8xf32>
    %c2_i32 = arith.constant 2 : i32
    %22 = vector.broadcast %c2_i32 : i32 to vector<8x8xi32>
    %23 = arith.cmpi eq, %14, %22 : vector<8x8xi32>
    %c2 = arith.constant 2 : index
    %24 = memref.load %arg7[%c2] : memref<16xf32, #tpu.memory_space<smem>>
    %25 = vector.broadcast %24 : f32 to vector<8x8xf32>
    %26 = arith.select %23, %25, %21 : vector<8x8xi1>, vector<8x8xf32>
    %c3_i32 = arith.constant 3 : i32
    %27 = vector.broadcast %c3_i32 : i32 to vector<8x8xi32>
    %28 = arith.cmpi eq, %14, %27 : vector<8x8xi32>
    %c3 = arith.constant 3 : index
    %29 = memref.load %arg7[%c3] : memref<16xf32, #tpu.memory_space<smem>>
    %30 = vector.broadcast %29 : f32 to vector<8x8xf32>
    %31 = arith.select %28, %30, %26 : vector<8x8xi1>, vector<8x8xf32>
    %c4_i32 = arith.constant 4 : i32
    %32 = vector.broadcast %c4_i32 : i32 to vector<8x8xi32>
    %33 = arith.cmpi eq, %14, %32 : vector<8x8xi32>
    %c4 = arith.constant 4 : index
    %34 = memref.load %arg7[%c4] : memref<16xf32, #tpu.memory_space<smem>>
    %35 = vector.broadcast %34 : f32 to vector<8x8xf32>
    %36 = arith.select %33, %35, %31 : vector<8x8xi1>, vector<8x8xf32>
    %c5_i32 = arith.constant 5 : i32
    %37 = vector.broadcast %c5_i32 : i32 to vector<8x8xi32>
    %38 = arith.cmpi eq, %14, %37 : vector<8x8xi32>
    %c5 = arith.constant 5 : index
    %39 = memref.load %arg7[%c5] : memref<16xf32, #tpu.memory_space<smem>>
    %40 = vector.broadcast %39 : f32 to vector<8x8xf32>
    %41 = arith.select %38, %40, %36 : vector<8x8xi1>, vector<8x8xf32>
    %c6_i32 = arith.constant 6 : i32
    %42 = vector.broadcast %c6_i32 : i32 to vector<8x8xi32>
    %43 = arith.cmpi eq, %14, %42 : vector<8x8xi32>
    %c6 = arith.constant 6 : index
    %44 = memref.load %arg7[%c6] : memref<16xf32, #tpu.memory_space<smem>>
    %45 = vector.broadcast %44 : f32 to vector<8x8xf32>
    %46 = arith.select %43, %45, %41 : vector<8x8xi1>, vector<8x8xf32>
    %c7_i32 = arith.constant 7 : i32
    %47 = vector.broadcast %c7_i32 : i32 to vector<8x8xi32>
    %48 = arith.cmpi eq, %14, %47 : vector<8x8xi32>
    %c7 = arith.constant 7 : index
    %49 = memref.load %arg7[%c7] : memref<16xf32, #tpu.memory_space<smem>>
    %50 = vector.broadcast %49 : f32 to vector<8x8xf32>
    %51 = arith.select %48, %50, %46 : vector<8x8xi1>, vector<8x8xf32>
    %c8_i32 = arith.constant 8 : i32
    %52 = vector.broadcast %c8_i32 : i32 to vector<8x8xi32>
    %53 = arith.cmpi eq, %14, %52 : vector<8x8xi32>
    %c8 = arith.constant 8 : index
    %54 = memref.load %arg7[%c8] : memref<16xf32, #tpu.memory_space<smem>>
    %55 = vector.broadcast %54 : f32 to vector<8x8xf32>
    %56 = arith.select %53, %55, %51 : vector<8x8xi1>, vector<8x8xf32>
    %c9_i32 = arith.constant 9 : i32
    %57 = vector.broadcast %c9_i32 : i32 to vector<8x8xi32>
    %58 = arith.cmpi eq, %14, %57 : vector<8x8xi32>
    %c9 = arith.constant 9 : index
    %59 = memref.load %arg7[%c9] : memref<16xf32, #tpu.memory_space<smem>>
    %60 = vector.broadcast %59 : f32 to vector<8x8xf32>
    %61 = arith.select %58, %60, %56 : vector<8x8xi1>, vector<8x8xf32>
    %c10_i32 = arith.constant 10 : i32
    %62 = vector.broadcast %c10_i32 : i32 to vector<8x8xi32>
    %63 = arith.cmpi eq, %14, %62 : vector<8x8xi32>
    %c10 = arith.constant 10 : index
    %64 = memref.load %arg7[%c10] : memref<16xf32, #tpu.memory_space<smem>>
    %65 = vector.broadcast %64 : f32 to vector<8x8xf32>
    %66 = arith.select %63, %65, %61 : vector<8x8xi1>, vector<8x8xf32>
    %c11_i32 = arith.constant 11 : i32
    %67 = vector.broadcast %c11_i32 : i32 to vector<8x8xi32>
    %68 = arith.cmpi eq, %14, %67 : vector<8x8xi32>
    %c11 = arith.constant 11 : index
    %69 = memref.load %arg7[%c11] : memref<16xf32, #tpu.memory_space<smem>>
    %70 = vector.broadcast %69 : f32 to vector<8x8xf32>
    %71 = arith.select %68, %70, %66 : vector<8x8xi1>, vector<8x8xf32>
    %c12_i32 = arith.constant 12 : i32
    %72 = vector.broadcast %c12_i32 : i32 to vector<8x8xi32>
    %73 = arith.cmpi eq, %14, %72 : vector<8x8xi32>
    %c12 = arith.constant 12 : index
    %74 = memref.load %arg7[%c12] : memref<16xf32, #tpu.memory_space<smem>>
    %75 = vector.broadcast %74 : f32 to vector<8x8xf32>
    %76 = arith.select %73, %75, %71 : vector<8x8xi1>, vector<8x8xf32>
    %c13_i32 = arith.constant 13 : i32
    %77 = vector.broadcast %c13_i32 : i32 to vector<8x8xi32>
    %78 = arith.cmpi eq, %14, %77 : vector<8x8xi32>
    %c13 = arith.constant 13 : index
    %79 = memref.load %arg7[%c13] : memref<16xf32, #tpu.memory_space<smem>>
    %80 = vector.broadcast %79 : f32 to vector<8x8xf32>
    %81 = arith.select %78, %80, %76 : vector<8x8xi1>, vector<8x8xf32>
    %c14_i32 = arith.constant 14 : i32
    %82 = vector.broadcast %c14_i32 : i32 to vector<8x8xi32>
    %83 = arith.cmpi eq, %14, %82 : vector<8x8xi32>
    %c14 = arith.constant 14 : index
    %84 = memref.load %arg7[%c14] : memref<16xf32, #tpu.memory_space<smem>>
    %85 = vector.broadcast %84 : f32 to vector<8x8xf32>
    %86 = arith.select %83, %85, %81 : vector<8x8xi1>, vector<8x8xf32>
    %c15_i32 = arith.constant 15 : i32
    %87 = vector.broadcast %c15_i32 : i32 to vector<8x8xi32>
    %88 = arith.cmpi eq, %14, %87 : vector<8x8xi32>
    %c15 = arith.constant 15 : index
    %89 = memref.load %arg7[%c15] : memref<16xf32, #tpu.memory_space<smem>>
    %90 = vector.broadcast %89 : f32 to vector<8x8xf32>
    %91 = arith.select %88, %90, %86 : vector<8x8xi1>, vector<8x8xf32>
    %92 = arith.mulf %91, %1 : vector<8x8xf32>
    %93 = arith.truncf %92 : vector<8x8xf32> to vector<8x8xbf16>
    %cst_17 = arith.constant dense<0.000000e+00> : vector<8x32xf32>
    %94 = tpu.matmul %93, %3, %cst_17 {dimension_numbers = #tpu.dot_dimension_numbers<[1], [0], [0], [1], [0, 0, 1, 1], [], []>} : vector<8x8xbf16>, vector<8x32xbf16>, vector<8x32xf32> -> vector<8x32xf32>
    %95 = arith.mulf %12, %12 : vector<8x32xf32>
    %cst_18 = arith.constant dense<0.000000e+00> : vector<8xf32>
    %96 = vector.multi_reduction <add>, %95, %cst_18 [1] : vector<8x32xf32> to vector<8xf32>
    %97 = vector.shape_cast %96 : vector<8xf32> to vector<8x1xf32>
    %98 = arith.mulf %94, %94 : vector<8x32xf32>
    %cst_19 = arith.constant dense<0.000000e+00> : vector<8xf32>
    %99 = vector.multi_reduction <add>, %98, %cst_19 [1] : vector<8x32xf32> to vector<8xf32>
    %100 = vector.shape_cast %99 : vector<8xf32> to vector<8x1xf32>
    %101 = arith.addf %97, %100 : vector<8x1xf32>
    %102 = vector.extract_strided_slice %10 {offsets = [0, 0], sizes = [8, 32], strides = [1, 1]} : vector<8x96xf32> to vector<8x32xf32>
    %103 = arith.mulf %102, %12 : vector<8x32xf32>
    %104 = arith.truncf %103 : vector<8x32xf32> to vector<8x32xbf16>
    %c0_20 = arith.constant 0 : index
    %c0_21 = arith.constant 0 : index
    %105 = vector.load %arg10[%c0_20, %c0_21] : memref<96x32xbf16, #tpu.memory_space<vmem>>, vector<32x32xbf16>
    %cst_22 = arith.constant dense<0.000000e+00> : vector<8x32xf32>
    %106 = tpu.matmul %104, %105, %cst_22 {dimension_numbers = #tpu.dot_dimension_numbers<[1], [0], [0], [1], [0, 0, 1, 1], [], []>} : vector<8x32xbf16>, vector<32x32xbf16>, vector<8x32xf32> -> vector<8x32xf32>
    %107 = vector.extract_strided_slice %10 {offsets = [0, 32], sizes = [8, 32], strides = [1, 1]} : vector<8x96xf32> to vector<8x32xf32>
    %108 = arith.mulf %107, %94 : vector<8x32xf32>
    %109 = arith.truncf %108 : vector<8x32xf32> to vector<8x32xbf16>
    %c32_23 = arith.constant 32 : index
    %c0_24 = arith.constant 0 : index
    %110 = vector.load %arg10[%c32_23, %c0_24] : memref<96x32xbf16, #tpu.memory_space<vmem>>, vector<32x32xbf16>
    %cst_25 = arith.constant dense<0.000000e+00> : vector<8x32xf32>
    %111 = tpu.matmul %109, %110, %cst_25 {dimension_numbers = #tpu.dot_dimension_numbers<[1], [0], [0], [1], [0, 0, 1, 1], [], []>} : vector<8x32xbf16>, vector<32x32xbf16>, vector<8x32xf32> -> vector<8x32xf32>
    %112 = arith.addf %106, %111 : vector<8x32xf32>
    %113 = vector.extract_strided_slice %7 {offsets = [0, 0], sizes = [8, 16], strides = [1, 1]} : vector<8x32xbf16> to vector<8x16xbf16>
    %114 = vector.extract_strided_slice %5 {offsets = [0, 0], sizes = [8, 16], strides = [1, 1]} : vector<8x32xbf16> to vector<8x16xbf16>
    %cst_26 = arith.constant dense<0.000000e+00> : vector<8x8xf32>
    %115 = tpu.matmul %113, %114, %cst_26 {dimension_numbers = #tpu.dot_dimension_numbers<[1], [1], [0], [0], [0, 0, 1, 0], [], []>} : vector<8x16xbf16>, vector<8x16xbf16>, vector<8x8xf32> -> vector<8x8xf32>
    %116 = arith.negf %115 : vector<8x8xf32>
    %117 = math.exp %116 : vector<8x8xf32>
    %cst_27 = arith.constant 1.000000e+00 : f32
    %118 = vector.broadcast %cst_27 : f32 to vector<8x8xf32>
    %119 = arith.addf %118, %117 : vector<8x8xf32>
    %120 = arith.divf %118, %119 : vector<8x8xf32>
    %121 = arith.mulf %115, %120 : vector<8x8xf32>
    %cst_28 = arith.constant 1.250000e-01 : f32
    %122 = vector.broadcast %cst_28 : f32 to vector<8x8xf32>
    %123 = arith.mulf %121, %122 : vector<8x8xf32>
    %124 = arith.mulf %123, %1 : vector<8x8xf32>
    %125 = arith.truncf %124 : vector<8x8xf32> to vector<8x8xbf16>
    %126 = vector.extract_strided_slice %3 {offsets = [0, 0], sizes = [8, 16], strides = [1, 1]} : vector<8x32xbf16> to vector<8x16xbf16>
    %cst_29 = arith.constant dense<0.000000e+00> : vector<8x16xf32>
    %127 = tpu.matmul %125, %126, %cst_29 {dimension_numbers = #tpu.dot_dimension_numbers<[1], [0], [0], [1], [0, 0, 1, 1], [], []>} : vector<8x8xbf16>, vector<8x16xbf16>, vector<8x16xf32> -> vector<8x16xf32>
    %128 = arith.mulf %127, %127 : vector<8x16xf32>
    %cst_30 = arith.constant dense<0.000000e+00> : vector<8xf32>
    %129 = vector.multi_reduction <add>, %128, %cst_30 [1] : vector<8x16xf32> to vector<8xf32>
    %130 = vector.shape_cast %129 : vector<8xf32> to vector<8x1xf32>
    %131 = arith.addf %101, %130 : vector<8x1xf32>
    %132 = vector.extract_strided_slice %10 {offsets = [0, 64], sizes = [8, 16], strides = [1, 1]} : vector<8x96xf32> to vector<8x16xf32>
    %133 = arith.mulf %132, %127 : vector<8x16xf32>
    %134 = arith.truncf %133 : vector<8x16xf32> to vector<8x16xbf16>
    %c64 = arith.constant 64 : index
    %c0_31 = arith.constant 0 : index
    %135 = vector.load %arg10[%c64, %c0_31] : memref<96x32xbf16, #tpu.memory_space<vmem>>, vector<16x32xbf16>
    %cst_32 = arith.constant dense<0.000000e+00> : vector<8x32xf32>
    %136 = tpu.matmul %134, %135, %cst_32 {dimension_numbers = #tpu.dot_dimension_numbers<[1], [0], [0], [1], [0, 0, 1, 1], [], []>} : vector<8x16xbf16>, vector<16x32xbf16>, vector<8x32xf32> -> vector<8x32xf32>
    %137 = arith.addf %112, %136 : vector<8x32xf32>
    %138 = vector.extract_strided_slice %7 {offsets = [0, 16], sizes = [8, 16], strides = [1, 1]} : vector<8x32xbf16> to vector<8x16xbf16>
    %139 = vector.extract_strided_slice %5 {offsets = [0, 16], sizes = [8, 16], strides = [1, 1]} : vector<8x32xbf16> to vector<8x16xbf16>
    %cst_33 = arith.constant dense<0.000000e+00> : vector<8x8xf32>
    %140 = tpu.matmul %138, %139, %cst_33 {dimension_numbers = #tpu.dot_dimension_numbers<[1], [1], [0], [0], [0, 0, 1, 0], [], []>} : vector<8x16xbf16>, vector<8x16xbf16>, vector<8x8xf32> -> vector<8x8xf32>
    %141 = arith.negf %140 : vector<8x8xf32>
    %142 = math.exp %141 : vector<8x8xf32>
    %cst_34 = arith.constant 1.000000e+00 : f32
    %143 = vector.broadcast %cst_34 : f32 to vector<8x8xf32>
    %144 = arith.addf %143, %142 : vector<8x8xf32>
    %145 = arith.divf %143, %144 : vector<8x8xf32>
    %146 = arith.mulf %140, %145 : vector<8x8xf32>
    %cst_35 = arith.constant 1.250000e-01 : f32
    %147 = vector.broadcast %cst_35 : f32 to vector<8x8xf32>
    %148 = arith.mulf %146, %147 : vector<8x8xf32>
    %149 = arith.mulf %148, %1 : vector<8x8xf32>
    %150 = arith.truncf %149 : vector<8x8xf32> to vector<8x8xbf16>
    %151 = vector.extract_strided_slice %3 {offsets = [0, 16], sizes = [8, 16], strides = [1, 1]} : vector<8x32xbf16> to vector<8x16xbf16>
    %cst_36 = arith.constant dense<0.000000e+00> : vector<8x16xf32>
    %152 = tpu.matmul %150, %151, %cst_36 {dimension_numbers = #tpu.dot_dimension_numbers<[1], [0], [0], [1], [0, 0, 1, 1], [], []>} : vector<8x8xbf16>, vector<8x16xbf16>, vector<8x16xf32> -> vector<8x16xf32>
    %153 = arith.mulf %152, %152 : vector<8x16xf32>
    %cst_37 = arith.constant dense<0.000000e+00> : vector<8xf32>
    %154 = vector.multi_reduction <add>, %153, %cst_37 [1] : vector<8x16xf32> to vector<8xf32>
    %155 = vector.shape_cast %154 : vector<8xf32> to vector<8x1xf32>
    %156 = arith.addf %131, %155 : vector<8x1xf32>
    %157 = vector.extract_strided_slice %10 {offsets = [0, 80], sizes = [8, 16], strides = [1, 1]} : vector<8x96xf32> to vector<8x16xf32>
    %158 = arith.mulf %157, %152 : vector<8x16xf32>
    %159 = arith.truncf %158 : vector<8x16xf32> to vector<8x16xbf16>
    %c80 = arith.constant 80 : index
    %c0_38 = arith.constant 0 : index
    %160 = vector.load %arg10[%c80, %c0_38] : memref<96x32xbf16, #tpu.memory_space<vmem>>, vector<16x32xbf16>
    %cst_39 = arith.constant dense<0.000000e+00> : vector<8x32xf32>
    %161 = tpu.matmul %159, %160, %cst_39 {dimension_numbers = #tpu.dot_dimension_numbers<[1], [0], [0], [1], [0, 0, 1, 1], [], []>} : vector<8x16xbf16>, vector<16x32xbf16>, vector<8x32xf32> -> vector<8x32xf32>
    %162 = arith.addf %137, %161 : vector<8x32xf32>
    %cst_40 = arith.constant 0.010416667 : f32
    %163 = vector.broadcast %cst_40 : f32 to vector<8x1xf32>
    %164 = arith.mulf %156, %163 : vector<8x1xf32>
    %cst_41 = arith.constant 9.99999997E-7 : f32
    %165 = vector.broadcast %cst_41 : f32 to vector<8x1xf32>
    %166 = arith.addf %164, %165 : vector<8x1xf32>
    %167 = math.rsqrt %166 : vector<8x1xf32>
    %168 = vector.broadcast %167 : vector<8x1xf32> to vector<8x32xf32>
    %169 = arith.mulf %168, %162 : vector<8x32xf32>
    %c0_42 = arith.constant 0 : index
    %c0_43 = arith.constant 0 : index
    %170 = vector.load %arg11[%c0_42, %c0_43] : memref<1x32xf32, #tpu.memory_space<vmem>>, vector<1x32xf32>
    %171 = vector.broadcast %170 : vector<1x32xf32> to vector<8x32xf32>
    %172 = arith.addf %169, %171 : vector<8x32xf32>
    %c0_44 = arith.constant 0 : index
    %c0_45 = arith.constant 0 : index
    %c0_46 = arith.constant 0 : index
    %173 = vector.load %arg8[%c0_44, %c0_45, %c0_46] : memref<1x8x32xbf16, #tpu.memory_space<vmem>>, vector<1x8x32xbf16>
    %174 = vector.shape_cast %173 : vector<1x8x32xbf16> to vector<8x32xbf16>
    %175 = arith.extf %174 : vector<8x32xbf16> to vector<8x32xf32>
    %176 = arith.addf %172, %175 : vector<8x32xf32>
    %177 = arith.mulf %176, %176 : vector<8x32xf32>
    %cst_47 = arith.constant dense<0.000000e+00> : vector<8xf32>
    %178 = vector.multi_reduction <add>, %177, %cst_47 [1] : vector<8x32xf32> to vector<8xf32>
    %179 = vector.shape_cast %178 : vector<8xf32> to vector<8x1xf32>
    %cst_48 = arith.constant 3.200000e+01 : f32
    %180 = vector.broadcast %cst_48 : f32 to vector<8x1xf32>
    %181 = arith.divf %179, %180 : vector<8x1xf32>
    %cst_49 = arith.constant 9.99999997E-7 : f32
    %182 = vector.broadcast %cst_49 : f32 to vector<8x1xf32>
    %183 = arith.addf %181, %182 : vector<8x1xf32>
    %184 = math.rsqrt %183 : vector<8x1xf32>
    %185 = vector.broadcast %184 : vector<8x1xf32> to vector<8x32xf32>
    %186 = arith.mulf %176, %185 : vector<8x32xf32>
    %187 = arith.truncf %186 : vector<8x32xf32> to vector<8x32xbf16>
    %c0_50 = arith.constant 0 : index
    %c0_51 = arith.constant 0 : index
    %188 = vector.load %arg12[%c0_50, %c0_51] : memref<32x32xbf16, #tpu.memory_space<vmem>>, vector<32x32xbf16>
    %cst_52 = arith.constant dense<0.000000e+00> : vector<8x32xf32>
    %189 = tpu.matmul %187, %188, %cst_52 {dimension_numbers = #tpu.dot_dimension_numbers<[1], [0], [0], [1], [0, 0, 1, 1], [], []>} : vector<8x32xbf16>, vector<32x32xbf16>, vector<8x32xf32> -> vector<8x32xf32>
    %c0_53 = arith.constant 0 : index
    %c0_54 = arith.constant 0 : index
    %190 = vector.load %arg13[%c0_53, %c0_54] : memref<32x32xbf16, #tpu.memory_space<vmem>>, vector<32x32xbf16>
    %cst_55 = arith.constant dense<0.000000e+00> : vector<8x32xf32>
    %191 = tpu.matmul %187, %190, %cst_55 {dimension_numbers = #tpu.dot_dimension_numbers<[1], [0], [0], [1], [0, 0, 1, 1], [], []>} : vector<8x32xbf16>, vector<32x32xbf16>, vector<8x32xf32> -> vector<8x32xf32>
    %192 = arith.negf %189 : vector<8x32xf32>
    %193 = math.exp %192 : vector<8x32xf32>
    %cst_56 = arith.constant 1.000000e+00 : f32
    %194 = vector.broadcast %cst_56 : f32 to vector<8x32xf32>
    %195 = arith.addf %194, %193 : vector<8x32xf32>
    %196 = arith.divf %194, %195 : vector<8x32xf32>
    %197 = arith.mulf %189, %196 : vector<8x32xf32>
    %198 = arith.mulf %197, %191 : vector<8x32xf32>
    %199 = arith.truncf %198 : vector<8x32xf32> to vector<8x32xbf16>
    %c0_57 = arith.constant 0 : index
    %c0_58 = arith.constant 0 : index
    %200 = vector.load %arg14[%c0_57, %c0_58] : memref<32x32xbf16, #tpu.memory_space<vmem>>, vector<32x32xbf16>
    %cst_59 = arith.constant dense<0.000000e+00> : vector<8x32xf32>
    %201 = tpu.matmul %199, %200, %cst_59 {dimension_numbers = #tpu.dot_dimension_numbers<[1], [0], [0], [1], [0, 0, 1, 1], [], []>} : vector<8x32xbf16>, vector<32x32xbf16>, vector<8x32xf32> -> vector<8x32xf32>
    %202 = arith.addf %201, %176 : vector<8x32xf32>
    %c0_60 = arith.constant 0 : index
    %c0_61 = arith.constant 0 : index
    %c0_62 = arith.constant 0 : index
    %203 = vector.load %arg9[%c0_60, %c0_61, %c0_62] : memref<1x8x1xf32, #tpu.memory_space<vmem>>, vector<1x8x1xf32>
    %204 = vector.shape_cast %203 : vector<1x8x1xf32> to vector<8x1xf32>
    %205 = vector.broadcast %204 : vector<8x1xf32> to vector<8x32xf32>
    %206 = arith.mulf %202, %205 : vector<8x32xf32>
    %207 = arith.truncf %206 : vector<8x32xf32> to vector<8x32xbf16>
    %c0_63 = arith.constant 0 : index
    %c0_64 = arith.constant 0 : index
    %c0_65 = arith.constant 0 : index
    %208 = vector.load %arg15[%c0_63, %c0_64, %c0_65] : memref<1x8x32xbf16, #tpu.memory_space<vmem>>, vector<1x8x32xbf16>
    %209 = vector.shape_cast %208 : vector<1x8x32xbf16> to vector<8x32xbf16>
    %210 = vector.shape_cast %207 : vector<8x32xbf16> to vector<1x8x32xbf16>
    tpu.vector_store %arg15[%c0_63, %c0_64, %c0_65], %210 {strides = array<i32>} : memref<1x8x32xbf16, #tpu.memory_space<vmem>>, vector<1x8x32xbf16>,
    return
  }
  func.func @transform_0(%arg0: i32, %arg1: i32) -> (i32, i32, i32) {
    %c0_i32 = arith.constant 0 : i32
    %c0_i32_0 = arith.constant 0 : i32
    return %arg1, %arg0, %c0_i32 : i32, i32, i32
  }
  func.func @transform_1(%arg0: i32, %arg1: i32) -> (i32, i32, i32) {
    %c0_i32 = arith.constant 0 : i32
    %c0_i32_0 = arith.constant 0 : i32
    %c0_i32_1 = arith.constant 0 : i32
    return %arg1, %c0_i32, %c0_i32_0 : i32, i32, i32
  }
  func.func @transform_2(%arg0: i32, %arg1: i32) -> (i32, i32) {
    %c0_i32 = arith.constant 0 : i32
    %c0_i32_0 = arith.constant 0 : i32
    return %arg0, %c0_i32 : i32, i32
  }
  func.func @transform_3(%arg0: i32, %arg1: i32) -> (i32, i32, i32) {
    %c0_i32 = arith.constant 0 : i32
    %c0_i32_0 = arith.constant 0 : i32
    return %arg1, %arg0, %c0_i32 : i32, i32, i32
  }
  func.func @transform_4(%arg0: i32, %arg1: i32) -> (i32, i32) {
    %c0_i32 = arith.constant 0 : i32
    %c0_i32_0 = arith.constant 0 : i32
    return %arg0, %c0_i32 : i32, i32
  }
  func.func @transform_5(%arg0: i32, %arg1: i32) -> i32 {
    %c0_i32 = arith.constant 0 : i32
    %c0_i32_0 = arith.constant 0 : i32
    return %c0_i32 : i32
  }
  func.func @transform_6(%arg0: i32, %arg1: i32) -> (i32, i32, i32) {
    %c0_i32 = arith.constant 0 : i32
    %c0_i32_0 = arith.constant 0 : i32
    return %arg1, %arg0, %c0_i32 : i32, i32, i32
  }
  func.func @transform_7(%arg0: i32, %arg1: i32) -> (i32, i32, i32) {
    %c0_i32 = arith.constant 0 : i32
    %c0_i32_0 = arith.constant 0 : i32
    return %arg1, %arg0, %c0_i32 : i32, i32, i32
  }
  func.func @transform_8(%arg0: i32, %arg1: i32) -> (i32, i32) {
    %c0_i32 = arith.constant 0 : i32
    %c0_i32_0 = arith.constant 0 : i32
    %c0_i32_1 = arith.constant 0 : i32
    return %c0_i32, %c0_i32_0 : i32, i32
  }
  func.func @transform_9(%arg0: i32, %arg1: i32) -> (i32, i32) {
    %c0_i32 = arith.constant 0 : i32
    %c0_i32_0 = arith.constant 0 : i32
    %c0_i32_1 = arith.constant 0 : i32
    return %c0_i32, %c0_i32_0 : i32, i32
  }
  func.func @transform_10(%arg0: i32, %arg1: i32) -> (i32, i32) {
    %c0_i32 = arith.constant 0 : i32
    %c0_i32_0 = arith.constant 0 : i32
    %c0_i32_1 = arith.constant 0 : i32
    return %c0_i32, %c0_i32_0 : i32, i32
  }
  func.func @transform_11(%arg0: i32, %arg1: i32) -> (i32, i32) {
    %c0_i32 = arith.constant 0 : i32
    %c0_i32_0 = arith.constant 0 : i32
    %c0_i32_1 = arith.constant 0 : i32
    return %c0_i32, %c0_i32_0 : i32, i32
  }
  func.func @transform_12(%arg0: i32, %arg1: i32) -> (i32, i32) {
    %c0_i32 = arith.constant 0 : i32
    %c0_i32_0 = arith.constant 0 : i32
    %c0_i32_1 = arith.constant 0 : i32
    return %c0_i32, %c0_i32_0 : i32, i32
  }
  func.func @transform_13(%arg0: i32, %arg1: i32) -> (i32, i32, i32) {
    %c0_i32 = arith.constant 0 : i32
    %c0_i32_0 = arith.constant 0 : i32
    return %arg1, %arg0, %c0_i32 : i32, i32, i32
  }
}

</mosaic_0001>

<llo_original>
// kernel: fuxi_jagged_forward.4
$region0: #{fuxi_jagged_forward.4}
  #allocation0 [shape = 'u32[]', space=smem, size = 0x4, offset = 0x4, fixed_abs, tag = 'smem constant byte address 0x4 - core index']
  #allocation1 [shape = 'u32[144,128]{1,0:T(1,128)}', space=vmem, size = 0x12000, scoped, tag = 'internal scratch']
  %s0 = inlined_call_operand.vmem [shape: bf16[16,32], index: 0, kind: input, shape index: {}]
  %s1 = inlined_call_operand.vmem [shape: bf16[32,128], index: 1, kind: input, shape index: {}]
  %s2 = inlined_call_operand.vmem [shape: bf16[32,64], index: 2, kind: input, shape index: {}]
  %s3 = inlined_call_operand.vmem [shape: bf16[16,128], index: 3, kind: output, shape index: {0}]
  %s4 = inlined_call_operand.vmem [shape: bf16[16,64], index: 4, kind: output, shape index: {1}]
  %5 = xla_tuple %s3, %s4
  %s6 = sld [smem:[#allocation0]]
  $region53: #{fuxi_jagged_forward.4} parent=0
    _
  %s8 = ssub.s32 1, %s6
  %s9 = scalar_select 0, %s8, %s6
  loop: start=0, step=1, limit=4
  $region2: #{fuxi_jagged_forward.4} parent=0 // loop_pre_header
    _
  $region3: #{fuxi_jagged_forward.4} parent=0 // loop_header
    %s11 = sphi 0, %s15
    %p12 = scmp.ge.s32.totalorder %s11, 4
    %s21 = sphi 0, %s23
    %s24 = sphi 0, %s21
    %s25 = sphi 0, %s24
    %s41 = sphi 0, %s25
    %s45 = sphi 0, %s45
    %s47 = sphi 0, %s45
    %s48 = sphi 0, %s47
    %s62 = sphi 0, %s48
    %s66 = sphi 0, %s66
    %s68 = sphi 0, %s66
    %s69 = sphi 0, %s68
    %s83 = sphi 0, %s69
    %s89 = sphi 0, %s91
    %s92 = sphi 0, %s89
    %s93 = sphi 0, %s92
    %s109 = sphi 0, %s93
    %s115 = sphi 0, %s117
    %s118 = sphi 0, %s115
    %s119 = sphi 0, %s118
    %s135 = sphi 0, %s119
  $region4: #{fuxi_jagged_forward.4} parent=0 // loop_header_branch
    %14 = sbr.rel (%p12) target = $region8
  $region5: #{fuxi_jagged_forward.4} parent=0 // loop_body
    %s16 = ssub.s32 %s11, 1
    %s17 = ssub.s32 %s11, 2
    %s18 = sadd.s32 %s11, 1
    %s19 = ssub.s32 %s11, %s18
    %p20 = scmp.eq.s32.totalorder %s19, 0
    %s22 = sadd.s32 %s21, 1
    %s23 = scalar_select %p20, %s21, %s22
    %p26 = pneg %p20
    %p27 = scmp.eq.s32.totalorder %s11, 1
    %p28 = por %p26, %p27
    %p29 = scmp.ne.s32.totalorder %s21, %s24
    %p30 = scmp.eq.s32.totalorder %s11, 0
    %p31 = por %p29, %p30
    %p32 = scmp.ne.s32.totalorder %s21, %s24
    %p33 = scmp.eq.s32.totalorder %s16, 1
    %p34 = por %p32, %p33
    %p35 = scmp.ne.s32.totalorder %s24, %s25
    %p36 = scmp.eq.s32.totalorder %s16, 0
    %p37 = por %p35, %p36
    %p38 = scmp.ne.s32.totalorder %s24, %s25
    %p39 = scmp.eq.s32.totalorder %s17, 1
    %p40 = por %p38, %p39
    %p42 = scmp.ne.s32.totalorder %s25, %s41
    %p43 = scmp.eq.s32.totalorder %s17, 0
    %p44 = por %p42, %p43
    %s46 = sadd.s32 %s45, 1
    %p49 = scmp.eq.s32.totalorder %s11, 1
    %p50 = scmp.ne.s32.totalorder %s45, %s47
    %p51 = scmp.eq.s32.totalorder %s11, 0
    %p52 = por %p50, %p51
    %p53 = scmp.ne.s32.totalorder %s45, %s47
    %p54 = scmp.eq.s32.totalorder %s16, 1
    %p55 = por %p53, %p54
    %p56 = scmp.ne.s32.totalorder %s47, %s48
    %p57 = scmp.eq.s32.totalorder %s16, 0
    %p58 = por %p56, %p57
    %p59 = scmp.ne.s32.totalorder %s47, %s48
    %p60 = scmp.eq.s32.totalorder %s17, 1
    %p61 = por %p59, %p60
    %p63 = scmp.ne.s32.totalorder %s48, %s62
    %p64 = scmp.eq.s32.totalorder %s17, 0
    %p65 = por %p63, %p64
    %s67 = sadd.s32 %s66, 1
    %p70 = scmp.eq.s32.totalorder %s11, 1
    %p71 = scmp.ne.s32.totalorder %s66, %s68
    %p72 = scmp.eq.s32.totalorder %s11, 0
    %p73 = por %p71, %p72
    %p74 = scmp.ne.s32.totalorder %s66, %s68
    %p75 = scmp.eq.s32.totalorder %s16, 1
    %p76 = por %p74, %p75
    %p77 = scmp.ne.s32.totalorder %s68, %s69
    %p78 = scmp.eq.s32.totalorder %s16, 0
    %p79 = por %p77, %p78
    %p80 = scmp.ne.s32.totalorder %s68, %s69
    %p81 = scmp.eq.s32.totalorder %s17, 1
    %p82 = por %p80, %p81
    %p84 = scmp.ne.s32.totalorder %s69, %s83
    %p85 = scmp.eq.s32.totalorder %s17, 0
    %p86 = por %p84, %p85
    %s87 = ssub.s32 %s11, %s18
    %p88 = scmp.eq.s32.totalorder %s87, 0
    %s90 = sadd.s32 %s89, 1
    %s91 = scalar_select %p88, %s89, %s90
    %p94 = pneg %p88
    %p95 = scmp.eq.s32.totalorder %s11, 1
    %p96 = por %p94, %p95
    %p97 = scmp.ne.s32.totalorder %s89, %s92
    %p98 = scmp.eq.s32.totalorder %s11, 0
    %p99 = por %p97, %p98
    %p100 = scmp.ne.s32.totalorder %s89, %s92
    %p101 = scmp.eq.s32.totalorder %s16, 1
    %p102 = por %p100, %p101
    %p103 = scmp.ne.s32.totalorder %s92, %s93
    %p104 = scmp.eq.s32.totalorder %s16, 0
    %p105 = por %p103, %p104
    %p106 = scmp.ne.s32.totalorder %s92, %s93
    %p107 = scmp.eq.s32.totalorder %s17, 1
    %p108 = por %p106, %p107
    %p110 = scmp.ne.s32.totalorder %s93, %s109
    %p111 = scmp.eq.s32.totalorder %s17, 0
    %p112 = por %p110, %p111
    %s113 = ssub.s32 %s11, %s18
    %p114 = scmp.eq.s32.totalorder %s113, 0
    %s116 = sadd.s32 %s115, 1
    %s117 = scalar_select %p114, %s115, %s116
    %p120 = pneg %p114
    %p121 = scmp.eq.s32.totalorder %s11, 1
    %p122 = por %p120, %p121
    %p123 = scmp.ne.s32.totalorder %s115, %s118
    %p124 = scmp.eq.s32.totalorder %s11, 0
    %p125 = por %p123, %p124
    %p126 = scmp.ne.s32.totalorder %s115, %s118
    %p127 = scmp.eq.s32.totalorder %s16, 1
    %p128 = por %p126, %p127
    %p129 = scmp.ne.s32.totalorder %s118, %s119
    %p130 = scmp.eq.s32.totalorder %s16, 0
    %p131 = por %p129, %p130
    %p132 = scmp.ne.s32.totalorder %s118, %s119
    %p133 = scmp.eq.s32.totalorder %s17, 1
    %p134 = por %p132, %p133
    %p136 = scmp.ne.s32.totalorder %s119, %s135
    %p137 = scmp.eq.s32.totalorder %s17, 0
    %p138 = por %p136, %p137
    %p139 = scmp.le.s32.totalorder 1, %s11
    %p140 = scmp.lt.s32.totalorder %s11, 3
    %p141 = pnand %p139, %p140
    %p142 = pneg %p141
    // Predicated region
    $region9: #{fuxi_jagged_forward.4} parent=5 // pred_check
      _
    $region10: #{fuxi_jagged_forward.4} parent=5 // pred_check_branch
      %144 = sbr.rel (%p141) target = $region12
    $region11: #{fuxi_jagged_forward.4} parent=5 // pred_region
      %s145 = ssub.s32 %s11, 1
      // Predicated region
      $region13: #{fuxi_jagged_forward.4} parent=11 // pred_check
        %p146 = pneg %p58
      $region14: #{fuxi_jagged_forward.4} parent=11 // pred_check_branch
        %148 = sbr.rel (%p146) target = $region16
      $region15: #{fuxi_jagged_forward.4} parent=11 // pred_region
        _
      $region16: #{fuxi_jagged_forward.4} parent=11 // pred_fallthru
        _
      // Predicated region
      $region17: #{fuxi_jagged_forward.4} parent=11 // pred_check
        %p149 = pneg %p79
      $region18: #{fuxi_jagged_forward.4} parent=11 // pred_check_branch
        %151 = sbr.rel (%p149) target = $region20
      $region19: #{fuxi_jagged_forward.4} parent=11 // pred_region
        _
      $region20: #{fuxi_jagged_forward.4} parent=11 // pred_fallthru
        _
    $region12: #{fuxi_jagged_forward.4} parent=5 // pred_fallthru
      _
    %p152 = scmp.lt.s32.totalorder %s11, 2
    // Predicated region
    $region21: #{fuxi_jagged_forward.4} parent=5 // pred_check
      %p153 = pneg %p152
    $region22: #{fuxi_jagged_forward.4} parent=5 // pred_check_branch
      %155 = sbr.rel (%p153) target = $region24
    $region23: #{fuxi_jagged_forward.4} parent=5 // pred_region
      // Predicated region
      $region25: #{fuxi_jagged_forward.4} parent=23 // pred_check
        %p156 = pneg %p31
      $region26: #{fuxi_jagged_forward.4} parent=23 // pred_check_branch
        %158 = sbr.rel (%p156) target = $region28
      $region27: #{fuxi_jagged_forward.4} parent=23 // pred_region
        %p159 = scmp.lt.s32.totalorder %s11, 1
        %s160 = scalar_select %p159, %s11, 1
        %s161 = smul.addr %s160, 4
        %s162 = scalar_lea.vmem %s0, %s161
      $region28: #{fuxi_jagged_forward.4} parent=23 // pred_fallthru
        _
    $region24: #{fuxi_jagged_forward.4} parent=5 // pred_fallthru
      _
    %p163 = scmp.le.s32.totalorder 1, %s11
    %p164 = scmp.lt.s32.totalorder %s11, 3
    %p165 = pnand %p163, %p164
    %p166 = pneg %p165
    // Predicated region
    $region29: #{fuxi_jagged_forward.4} parent=5 // pred_check
      _
    $region30: #{fuxi_jagged_forward.4} parent=5 // pred_check_branch
      %168 = sbr.rel (%p165) target = $region32
    $region31: #{fuxi_jagged_forward.4} parent=5 // pred_region
      %s169 = ssub.s32 %s11, 1
      %p170 = scmp.lt.s32.totalorder %s16, 1
      %s171 = scalar_select %p170, %s16, 1
      %s172 = smul.addr %s171, 4
      %s173 = scalar_lea.vmem %s0, %s172
      %p174 = pneg %p37
      %p175 = pneg %p34
      %p176 = pneg %p58
      %p177 = pneg %p55
      %p178 = pneg %p79
      %p179 = pneg %p76
      %p180 = pneg %p105
      %p181 = pneg %p102
      %p182 = scmp.lt.s32.totalorder %s16, 1
      %s183 = scalar_select %p182, %s16, 1
      %s184 = smul.addr %s183, 4
      %s185 = scalar_lea.vmem %s3, %s184
      %p186 = pneg %p131
      %p187 = pneg %p128
      %p188 = scmp.lt.s32.totalorder %s16, 1
      %s189 = scalar_select %p188, %s16, 1
      %s190 = smul.addr %s189, 4
      %s191 = scalar_lea.vmem %s4, %s190
      %p192 = scmp.lt.s32.totalorder %s16, 1
      %s193 = scalar_select %p192, %s16, 1
      %s194 = smul.addr %s193, 4
      %s195 = scalar_lea.vmem %s0, %s194
      %p196 = scmp.lt.s32.totalorder %s16, 1
      %s197 = scalar_select %p196, %s16, 1
      %s198 = smul.addr %s197, 4
      %s199 = scalar_lea.vmem %s3, %s198
      %p200 = scmp.lt.s32.totalorder %s16, 1
      %s201 = scalar_select %p200, %s16, 1
      %s202 = smul.addr %s201, 4
      %s203 = scalar_lea.vmem %s4, %s202
      %v205 = vld [vmem:[%s195] sm:$0xf]
      %v206 = vunpack.c.l.bf16 %v205
      %v207 = vmul.f32 %v206, %v206
      %vm208 = vcmask 261120
      %v209 = vsel %vm208, %v207, 0.0
      %210 = vadd.xlane.f32.xlu0 %v209
      %v211 = vpop.xlane.xlu0 %210
      %v212 = vrcp.pop 32.0
      %v213 = vmul.f32 %v211, %v212
      %v214 = vadd.f32 %v213, 1e-06
      %v215 = vrsqrt.pop %v214
      %v216 = vmul.f32 %v206, %v215
      %v217 = vpack.c.bf16 %v216, %v216
      %v218 = vld [vmem:[%s1] sm:$0xf]
      %v219 = vld [vmem:[%s1 + $0x4] sm:$0xf]
      %v220 = vld [vmem:[%s1 + $0x8] sm:$0xf]
      %v221 = vld [vmem:[%s1 + $0xc] sm:$0xf]
      %v226 = vunpack.c.l.b16 %v218
      %v227 = vunpack.c.l.b16 %v219
      %v228 = vunpack.c.l.b16 %v220
      %v229 = vunpack.c.l.b16 %v221
      %v230 = vpack.c.b16 %v227, %v226
      %v231 = vpack.c.b16 %v229, %v228
      %v235 = vsel %vm208, %v217, 0
      %237 = vmatprep.subr.bf16.mxu0 0
      %238 = vmatpush1.bf16.msra.mxu0 0
      %239 = vmatprep.subr.bf16.mxu0 0
      %240 = vmatpush1.bf16.msra.mxu0 0
      %241 = vmatprep.subr.bf16.mxu0 0
      %242 = vmatpush1.bf16.msra.mxu0 0
      %243 = vmatprep.subr.bf16.mxu0 0
      %244 = vmatpush1.bf16.msra.mxu0 0
      %245 = vmatprep.subr.bf16.mxu0 0
      %246 = vmatpush1.bf16.msra.mxu0 0
      %247 = vmatprep.subr.bf16.mxu0 0
      %248 = vmatpush1.bf16.msra.mxu0 0
      %249 = vmatprep.subr.bf16.mxu0 0
      %250 = vmatpush1.bf16.msra.mxu0 %v231
      %251 = vmatprep.subr.bf16.mxu0 0
      %252 = vmatpush1.bf16.msra.mxu0 %v230
      %253 = vmatprep.subr.bf16.mxu0 0
      %254 = vmatpush2.bf16.msra.mxu0 0
      %255 = vmatprep.subr.bf16.mxu0 0
      %256 = vmatpush2.bf16.msra.mxu0 0
      %257 = vmatprep.subr.bf16.mxu0 0
      %258 = vmatpush2.bf16.msra.mxu0 0
      %259 = vmatprep.subr.bf16.mxu0 0
      %260 = vmatpush2.bf16.msra.mxu0 0
      %261 = vmatprep.subr.bf16.mxu0 0
      %262 = vmatpush2.bf16.msra.mxu0 0
      %263 = vmatprep.subr.bf16.mxu0 0
      %264 = vmatpush2.bf16.msra.mxu0 0
      %265 = vmatprep.subr.bf16.mxu0 0
      %266 = vmatpush2.bf16.msra.mxu0 0
      %267 = vmatprep.subr.bf16.mxu0 0
      %268 = vmatpush2.bf16.msra.mxu0 0
      %269 = vmatprep.mubr.bf16.mxu0 0
      %270 = vmatmul.mubr.bf16.gmra.mxu0 %v235
      %v271 = vpop.f32.mrf.mxu0
      %v272 = vadd.f32 0.0, %v271
      %v273 = vpop.f32.mrf.mxu0
      %v274 = vpop.f32.mrf.mxu0
      %v275 = vpop.f32.mrf.mxu0
      %276 = vdwg.mxu0
      %v277 = vxor.u32 %v272, 2147483648
      %v278 = vmul.f32 %v277, 1.442695
      %v279 = vpow.pop %v278
      %v280 = vadd.f32 %v279, 1.0
      %v281 = vrcp.pop %v280
      %v282 = vmul.f32 1.0, %v281
      %v283 = vmul.f32 %v272, %v282
      %v284 = vpack.c.bf16 %v283, %v283
      %285 = vst [vmem:[%s199] sm:$0xf] %v284
      %v286 = vld [vmem:[%s2] sm:$0xf]
      %v287 = vld [vmem:[%s2 + $0x4] sm:$0xf]
      %v288 = vld [vmem:[%s2 + $0x8] sm:$0xf]
      %v289 = vld [vmem:[%s2 + $0xc] sm:$0xf]
      %v294 = vunpack.c.l.b16 %v286
      %v295 = vunpack.c.l.b16 %v287
      %v296 = vunpack.c.l.b16 %v288
      %v297 = vunpack.c.l.b16 %v289
      %v298 = vpack.c.b16 %v295, %v294
      %v299 = vpack.c.b16 %v297, %v296
      %302 = vmatprep.subr.bf16.mxu0 0
      %303 = vmatpush1.bf16.msra.mxu0 0
      %304 = vmatprep.subr.bf16.mxu0 0
      %305 = vmatpush1.bf16.msra.mxu0 0
      %306 = vmatprep.subr.bf16.mxu0 0
      %307 = vmatpush1.bf16.msra.mxu0 0
      %308 = vmatprep.subr.bf16.mxu0 0
      %309 = vmatpush1.bf16.msra.mxu0 0
      %310 = vmatprep.subr.bf16.mxu0 0
      %311 = vmatpush1.bf16.msra.mxu0 0
      %312 = vmatprep.subr.bf16.mxu0 0
      %313 = vmatpush1.bf16.msra.mxu0 0
      %314 = vmatprep.subr.bf16.mxu0 0
      %315 = vmatpush1.bf16.msra.mxu0 %v299
      %316 = vmatprep.subr.bf16.mxu0 0
      %317 = vmatpush1.bf16.msra.mxu0 %v298
      %318 = vmatprep.subr.bf16.mxu0 0
      %319 = vmatpush2.bf16.msra.mxu0 0
      %320 = vmatprep.subr.bf16.mxu0 0
      %321 = vmatpush2.bf16.msra.mxu0 0
      %322 = vmatprep.subr.bf16.mxu0 0
      %323 = vmatpush2.bf16.msra.mxu0 0
      %324 = vmatprep.subr.bf16.mxu0 0
      %325 = vmatpush2.bf16.msra.mxu0 0
      %326 = vmatprep.subr.bf16.mxu0 0
      %327 = vmatpush2.bf16.msra.mxu0 0
      %328 = vmatprep.subr.bf16.mxu0 0
      %329 = vmatpush2.bf16.msra.mxu0 0
      %330 = vmatprep.subr.bf16.mxu0 0
      %331 = vmatpush2.bf16.msra.mxu0 0
      %332 = vmatprep.subr.bf16.mxu0 0
      %333 = vmatpush2.bf16.msra.mxu0 0
      %334 = vmatprep.mubr.bf16.mxu0 0
      %335 = vmatmul.mubr.bf16.gmra.mxu0 %v235
      %v336 = vpop.f32.mrf.mxu0
      %v337 = vadd.f32 0.0, %v336
      %v338 = vpop.f32.mrf.mxu0
      %v339 = vpop.f32.mrf.mxu0
      %v340 = vpop.f32.mrf.mxu0
      %341 = vdwg.mxu0
      %v342 = vxor.u32 %v337, 2147483648
      %v343 = vmul.f32 %v342, 1.442695
      %v344 = vpow.pop %v343
      %v345 = vadd.f32 %v344, 1.0
      %v346 = vrcp.pop %v345
      %v347 = vmul.f32 1.0, %v346
      %v348 = vmul.f32 %v337, %v347
      %v349 = vpack.c.bf16 %v348, %v348
      %vm350 = vcmask 519168
      %351 = vst.msk [vmem:[%s203] sm:$0xf] %vm350, %v349
      %p352 = scmp.lt.s32.totalorder %s16, 1
      %s353 = scalar_select %p352, %s16, 1
      %s354 = smul.addr %s353, 4
      %s355 = scalar_lea.vmem %s3, %s354
      %p356 = scmp.lt.s32.totalorder %s16, 1
      %s357 = scalar_select %p356, %s16, 1
      %s358 = smul.addr %s357, 4
      %s359 = scalar_lea.vmem %s4, %s358
      // Predicated region
      $region33: #{fuxi_jagged_forward.4} parent=31 // pred_check
        %p360 = pneg %p102
      $region34: #{fuxi_jagged_forward.4} parent=31 // pred_check_branch
        %362 = sbr.rel (%p360) target = $region36
      $region35: #{fuxi_jagged_forward.4} parent=31 // pred_region
        _
      $region36: #{fuxi_jagged_forward.4} parent=31 // pred_fallthru
        _
      // Predicated region
      $region37: #{fuxi_jagged_forward.4} parent=31 // pred_check
        %p363 = pneg %p128
      $region38: #{fuxi_jagged_forward.4} parent=31 // pred_check_branch
        %365 = sbr.rel (%p363) target = $region40
      $region39: #{fuxi_jagged_forward.4} parent=31 // pred_region
        _
      $region40: #{fuxi_jagged_forward.4} parent=31 // pred_fallthru
        _
    $region32: #{fuxi_jagged_forward.4} parent=5 // pred_fallthru
      _
    %p366 = scmp.le.s32.totalorder 2, %s11
    // Predicated region
    $region41: #{fuxi_jagged_forward.4} parent=5 // pred_check
      %p367 = pneg %p366
    $region42: #{fuxi_jagged_forward.4} parent=5 // pred_check_branch
      %369 = sbr.rel (%p367) target = $region44
    $region43: #{fuxi_jagged_forward.4} parent=5 // pred_region
      %s370 = ssub.s32 %s11, 2
      // Predicated region
      $region45: #{fuxi_jagged_forward.4} parent=43 // pred_check
        %p371 = pneg %p108
      $region46: #{fuxi_jagged_forward.4} parent=43 // pred_check_branch
        %373 = sbr.rel (%p371) target = $region48
      $region47: #{fuxi_jagged_forward.4} parent=43 // pred_region
        %p374 = scmp.lt.s32.totalorder %s17, 1
        %s375 = scalar_select %p374, %s17, 1
        %s376 = smul.addr %s375, 4
        %s377 = scalar_lea.vmem %s3, %s376
      $region48: #{fuxi_jagged_forward.4} parent=43 // pred_fallthru
        _
      // Predicated region
      $region49: #{fuxi_jagged_forward.4} parent=43 // pred_check
        %p378 = pneg %p134
      $region50: #{fuxi_jagged_forward.4} parent=43 // pred_check_branch
        %380 = sbr.rel (%p378) target = $region52
      $region51: #{fuxi_jagged_forward.4} parent=43 // pred_region
        %p381 = scmp.lt.s32.totalorder %s17, 1
        %s382 = scalar_select %p381, %s17, 1
        %s383 = smul.addr %s382, 4
        %s384 = scalar_lea.vmem %s4, %s383
      $region52: #{fuxi_jagged_forward.4} parent=43 // pred_fallthru
        _
    $region44: #{fuxi_jagged_forward.4} parent=5 // pred_fallthru
      _
  $region6: #{fuxi_jagged_forward.4} parent=0 // loop_footer
    %s15 = sadd.s32 1, %s11
  $region7: #{fuxi_jagged_forward.4} parent=0 // loop_footer_branch
    %10 = sbr.rel target = $region3
  $region8: #{fuxi_jagged_forward.4} parent=0 // loop_exit
    _

// kernel: fuxi_jagged_forward.5
$region0: #{fuxi_jagged_forward.5}
  #allocation0 [shape = 'u32[]', space=smem, size = 0x4, offset = 0x4, fixed_abs, tag = 'smem constant byte address 0x4 - core index']
  #allocation1 [shape = 'u32[144,128]{1,0:T(1,128)}', space=vmem, size = 0x12000, scoped, tag = 'internal scratch']
  %s0 = inlined_call_operand.vmem [shape: bf16[2,8,128], index: 0, kind: input, shape index: {}]
  %s1 = inlined_call_operand.vmem [shape: bf16[2,8,64], index: 1, kind: input, shape index: {}]
  %s2 = inlined_call_operand.vmem [shape: bf16[8,8], index: 2, kind: input, shape index: {}]
  %s3 = inlined_call_operand.vmem [shape: s32[2,8,8], index: 3, kind: input, shape index: {}]
  %s4 = inlined_call_operand.vmem [shape: bf16[8,8], index: 4, kind: input, shape index: {}]
  %s5 = inlined_call_operand.vmem [shape: f32[16], index: 5, kind: input, shape index: {}]
  %s6 = inlined_call_operand.vmem [shape: bf16[2,8,32], index: 6, kind: input, shape index: {}]
  %s7 = inlined_call_operand.vmem [shape: f32[2,8,1], index: 7, kind: input, shape index: {}]
  %s8 = inlined_call_operand.vmem [shape: bf16[96,32], index: 8, kind: input, shape index: {}]
  %s9 = inlined_call_operand.vmem [shape: f32[1,32], index: 9, kind: input, shape index: {}]
  %s10 = inlined_call_operand.vmem [shape: bf16[32,32], index: 10, kind: input, shape index: {}]
  %s11 = inlined_call_operand.vmem [shape: bf16[32,32], index: 11, kind: input, shape index: {}]
  %s12 = inlined_call_operand.vmem [shape: bf16[32,32], index: 12, kind: input, shape index: {}]
  %s13 = inlined_call_operand.vmem [shape: bf16[2,8,32], index: 13, kind: output, shape index: {}]
  %s14 = sld [smem:[#allocation0]]
  $region89: #{fuxi_jagged_forward.5} parent=0
    _
  %s16 = ssub.s32 1, %s14
  %s17 = scalar_select 0, %s16, %s14
  $region1: #{fuxi_jagged_forward.5} parent=0
    #allocation2 [shape = 'u8[512]{0}', space=smem, size = 0x200, scoped, tag = 'input window, operand 5, single buffered']
    #allocation3 [shape = 's32[2]{0}', space=sflag, size = 0x8, scoped, tag = 'scoped memory for fuxi_jagged_forward.5']
    %18 = vsyncpa [#allocation3], 0
    loop: start=0, step=1, limit=4
    $region2: #{fuxi_jagged_forward.5} parent=1 // loop_pre_header
      _
    $region3: #{fuxi_jagged_forward.5} parent=1 // loop_header
      %s20 = sphi 0, %s24
      %p21 = scmp.ge.s32.totalorder %s20, 4
      %s27 = sphi 0, %s39
      %s28 = sphi 0, %s35
      %s29 = sphi 0, %s27
      %s30 = sphi 0, %s28
      %s31 = sphi 0, %s29
      %s32 = sphi 0, %s30
      %s44 = sphi 0, %s46
      %s47 = sphi 0, %s44
      %s48 = sphi 0, %s47
      %s64 = sphi 0, %s48
      %s70 = sphi 0, %s72
      %s73 = sphi 0, %s70
      %s74 = sphi 0, %s73
      %s90 = sphi 0, %s74
      %s96 = sphi 0, %s98
      %s99 = sphi 0, %s96
      %s100 = sphi 0, %s99
      %s116 = sphi 0, %s100
      %s124 = sphi 0, %s126
      %s127 = sphi 0, %s124
      %s128 = sphi 0, %s127
      %s144 = sphi 0, %s128
      %s150 = sphi 0, %s152
      %s153 = sphi 0, %s150
      %s154 = sphi 0, %s153
      %s170 = sphi 0, %s154
      %s174 = sphi 0, %s174
      %s176 = sphi 0, %s174
      %s177 = sphi 0, %s176
      %s191 = sphi 0, %s177
      %s199 = sphi 0, %s201
      %s202 = sphi 0, %s199
      %s203 = sphi 0, %s202
      %s219 = sphi 0, %s203
      %s227 = sphi 0, %s229
      %s230 = sphi 0, %s227
      %s231 = sphi 0, %s230
      %s247 = sphi 0, %s231
      %s251 = sphi 0, %s251
      %s253 = sphi 0, %s251
      %s254 = sphi 0, %s253
      %s268 = sphi 0, %s254
      %s272 = sphi 0, %s272
      %s274 = sphi 0, %s272
      %s275 = sphi 0, %s274
      %s289 = sphi 0, %s275
      %s293 = sphi 0, %s293
      %s295 = sphi 0, %s293
      %s296 = sphi 0, %s295
      %s310 = sphi 0, %s296
      %s314 = sphi 0, %s314
      %s316 = sphi 0, %s314
      %s317 = sphi 0, %s316
      %s331 = sphi 0, %s317
      %s335 = sphi 0, %s335
      %s337 = sphi 0, %s335
      %s338 = sphi 0, %s337
      %s352 = sphi 0, %s338
      %s360 = sphi 0, %s362
      %s363 = sphi 0, %s360
      %s364 = sphi 0, %s363
      %s380 = sphi 0, %s364
    $region4: #{fuxi_jagged_forward.5} parent=1 // loop_header_branch
      %23 = sbr.rel (%p21) target = $region8
    $region5: #{fuxi_jagged_forward.5} parent=1 // loop_body
      %s25 = ssub.s32 %s20, 1
      %s26 = ssub.s32 %s20, 2
      %s33 = sadd.s32 1, %s28
      %p34 = scmp.ge.s32.totalorder %s33, 2
      %s35 = scalar_select %p34, 0, %s33
      %s36 = sadd.s32 1, %s27
      %s37 = scalar_select %p34, %s36, %s27
      %p38 = scmp.ge.s32.totalorder %s37, 1
      %s39 = scalar_select %p38, 0, %s37
      %s40 = ssub.s32 %s28, %s35
      %s41 = ssub.s32 %s27, %s39
      %s42 = sor.u32 %s40, %s41
      %p43 = scmp.eq.s32.totalorder %s42, 0
      %s45 = sadd.s32 %s44, 1
      %s46 = scalar_select %p43, %s44, %s45
      %p49 = pneg %p43
      %p50 = scmp.eq.s32.totalorder %s20, 1
      %p51 = por %p49, %p50
      %p52 = scmp.ne.s32.totalorder %s44, %s47
      %p53 = scmp.eq.s32.totalorder %s20, 0
      %p54 = por %p52, %p53
      %p55 = scmp.ne.s32.totalorder %s44, %s47
      %p56 = scmp.eq.s32.totalorder %s25, 1
      %p57 = por %p55, %p56
      %p58 = scmp.ne.s32.totalorder %s47, %s48
      %p59 = scmp.eq.s32.totalorder %s25, 0
      %p60 = por %p58, %p59
      %p61 = scmp.ne.s32.totalorder %s47, %s48
      %p62 = scmp.eq.s32.totalorder %s26, 1
      %p63 = por %p61, %p62
      %p65 = scmp.ne.s32.totalorder %s48, %s64
      %p66 = scmp.eq.s32.totalorder %s26, 0
      %p67 = por %p65, %p66
      %s68 = ssub.s32 %s28, %s35
      %p69 = scmp.eq.s32.totalorder %s68, 0
      %s71 = sadd.s32 %s70, 1
      %s72 = scalar_select %p69, %s70, %s71
      %p75 = pneg %p69
      %p76 = scmp.eq.s32.totalorder %s20, 1
      %p77 = por %p75, %p76
      %p78 = scmp.ne.s32.totalorder %s70, %s73
      %p79 = scmp.eq.s32.totalorder %s20, 0
      %p80 = por %p78, %p79
      %p81 = scmp.ne.s32.totalorder %s70, %s73
      %p82 = scmp.eq.s32.totalorder %s25, 1
      %p83 = por %p81, %p82
      %p84 = scmp.ne.s32.totalorder %s73, %s74
      %p85 = scmp.eq.s32.totalorder %s25, 0
      %p86 = por %p84, %p85
      %p87 = scmp.ne.s32.totalorder %s73, %s74
      %p88 = scmp.eq.s32.totalorder %s26, 1
      %p89 = por %p87, %p88
      %p91 = scmp.ne.s32.totalorder %s74, %s90
      %p92 = scmp.eq.s32.totalorder %s26, 0
      %p93 = por %p91, %p92
      %s94 = ssub.s32 %s27, %s39
      %p95 = scmp.eq.s32.totalorder %s94, 0
      %s97 = sadd.s32 %s96, 1
      %s98 = scalar_select %p95, %s96, %s97
      %p101 = pneg %p95
      %p102 = scmp.eq.s32.totalorder %s20, 1
      %p103 = por %p101, %p102
      %p104 = scmp.ne.s32.totalorder %s96, %s99
      %p105 = scmp.eq.s32.totalorder %s20, 0
      %p106 = por %p104, %p105
      %p107 = scmp.ne.s32.totalorder %s96, %s99
      %p108 = scmp.eq.s32.totalorder %s25, 1
      %p109 = por %p107, %p108
      %p110 = scmp.ne.s32.totalorder %s99, %s100
      %p111 = scmp.eq.s32.totalorder %s25, 0
      %p112 = por %p110, %p111
      %p113 = scmp.ne.s32.totalorder %s99, %s100
      %p114 = scmp.eq.s32.totalorder %s26, 1
      %p115 = por %p113, %p114
      %p117 = scmp.ne.s32.totalorder %s100, %s116
      %p118 = scmp.eq.s32.totalorder %s26, 0
      %p119 = por %p117, %p118
      %s120 = ssub.s32 %s28, %s35
      %s121 = ssub.s32 %s27, %s39
      %s122 = sor.u32 %s120, %s121
      %p123 = scmp.eq.s32.totalorder %s122, 0
      %s125 = sadd.s32 %s124, 1
      %s126 = scalar_select %p123, %s124, %s125
      %p129 = pneg %p123
      %p130 = scmp.eq.s32.totalorder %s20, 1
      %p131 = por %p129, %p130
      %p132 = scmp.ne.s32.totalorder %s124, %s127
      %p133 = scmp.eq.s32.totalorder %s20, 0
      %p134 = por %p132, %p133
      %p135 = scmp.ne.s32.totalorder %s124, %s127
      %p136 = scmp.eq.s32.totalorder %s25, 1
      %p137 = por %p135, %p136
      %p138 = scmp.ne.s32.totalorder %s127, %s128
      %p139 = scmp.eq.s32.totalorder %s25, 0
      %p140 = por %p138, %p139
      %p141 = scmp.ne.s32.totalorder %s127, %s128
      %p142 = scmp.eq.s32.totalorder %s26, 1
      %p143 = por %p141, %p142
      %p145 = scmp.ne.s32.totalorder %s128, %s144
      %p146 = scmp.eq.s32.totalorder %s26, 0
      %p147 = por %p145, %p146
      %s148 = ssub.s32 %s27, %s39
      %p149 = scmp.eq.s32.totalorder %s148, 0
      %s151 = sadd.s32 %s150, 1
      %s152 = scalar_select %p149, %s150, %s151
      %p155 = pneg %p149
      %p156 = scmp.eq.s32.totalorder %s20, 1
      %p157 = por %p155, %p156
      %p158 = scmp.ne.s32.totalorder %s150, %s153
      %p159 = scmp.eq.s32.totalorder %s20, 0
      %p160 = por %p158, %p159
      %p161 = scmp.ne.s32.totalorder %s150, %s153
      %p162 = scmp.eq.s32.totalorder %s25, 1
      %p163 = por %p161, %p162
      %p164 = scmp.ne.s32.totalorder %s153, %s154
      %p165 = scmp.eq.s32.totalorder %s25, 0
      %p166 = por %p164, %p165
      %p167 = scmp.ne.s32.totalorder %s153, %s154
      %p168 = scmp.eq.s32.totalorder %s26, 1
      %p169 = por %p167, %p168
      %p171 = scmp.ne.s32.totalorder %s154, %s170
      %p172 = scmp.eq.s32.totalorder %s26, 0
      %p173 = por %p171, %p172
      %s175 = sadd.s32 %s174, 1
      %p178 = scmp.eq.s32.totalorder %s20, 1
      %p179 = scmp.ne.s32.totalorder %s174, %s176
      %p180 = scmp.eq.s32.totalorder %s20, 0
      %p181 = por %p179, %p180
      %p182 = scmp.ne.s32.totalorder %s174, %s176
      %p183 = scmp.eq.s32.totalorder %s25, 1
      %p184 = por %p182, %p183
      %p185 = scmp.ne.s32.totalorder %s176, %s177
      %p186 = scmp.eq.s32.totalorder %s25, 0
      %p187 = por %p185, %p186
      %p188 = scmp.ne.s32.totalorder %s176, %s177
      %p189 = scmp.eq.s32.totalorder %s26, 1
      %p190 = por %p188, %p189
      %p192 = scmp.ne.s32.totalorder %s177, %s191
      %p193 = scmp.eq.s32.totalorder %s26, 0
      %p194 = por %p192, %p193
      %s195 = ssub.s32 %s28, %s35
      %s196 = ssub.s32 %s27, %s39
      %s197 = sor.u32 %s195, %s196
      %p198 = scmp.eq.s32.totalorder %s197, 0
      %s200 = sadd.s32 %s199, 1
      %s201 = scalar_select %p198, %s199, %s200
      %p204 = pneg %p198
      %p205 = scmp.eq.s32.totalorder %s20, 1
      %p206 = por %p204, %p205
      %p207 = scmp.ne.s32.totalorder %s199, %s202
      %p208 = scmp.eq.s32.totalorder %s20, 0
      %p209 = por %p207, %p208
      %p210 = scmp.ne.s32.totalorder %s199, %s202
      %p211 = scmp.eq.s32.totalorder %s25, 1
      %p212 = por %p210, %p211
      %p213 = scmp.ne.s32.totalorder %s202, %s203
      %p214 = scmp.eq.s32.totalorder %s25, 0
      %p215 = por %p213, %p214
      %p216 = scmp.ne.s32.totalorder %s202, %s203
      %p217 = scmp.eq.s32.totalorder %s26, 1
      %p218 = por %p216, %p217
      %p220 = scmp.ne.s32.totalorder %s203, %s219
      %p221 = scmp.eq.s32.totalorder %s26, 0
      %p222 = por %p220, %p221
      %s223 = ssub.s32 %s28, %s35
      %s224 = ssub.s32 %s27, %s39
      %s225 = sor.u32 %s223, %s224
      %p226 = scmp.eq.s32.totalorder %s225, 0
      %s228 = sadd.s32 %s227, 1
      %s229 = scalar_select %p226, %s227, %s228
      %p232 = pneg %p226
      %p233 = scmp.eq.s32.totalorder %s20, 1
      %p234 = por %p232, %p233
      %p235 = scmp.ne.s32.totalorder %s227, %s230
      %p236 = scmp.eq.s32.totalorder %s20, 0
      %p237 = por %p235, %p236
      %p238 = scmp.ne.s32.totalorder %s227, %s230
      %p239 = scmp.eq.s32.totalorder %s25, 1
      %p240 = por %p238, %p239
      %p241 = scmp.ne.s32.totalorder %s230, %s231
      %p242 = scmp.eq.s32.totalorder %s25, 0
      %p243 = por %p241, %p242
      %p244 = scmp.ne.s32.totalorder %s230, %s231
      %p245 = scmp.eq.s32.totalorder %s26, 1
      %p246 = por %p244, %p245
      %p248 = scmp.ne.s32.totalorder %s231, %s247
      %p249 = scmp.eq.s32.totalorder %s26, 0
      %p250 = por %p248, %p249
      %s252 = sadd.s32 %s251, 1
      %p255 = scmp.eq.s32.totalorder %s20, 1
      %p256 = scmp.ne.s32.totalorder %s251, %s253
      %p257 = scmp.eq.s32.totalorder %s20, 0
      %p258 = por %p256, %p257
      %p259 = scmp.ne.s32.totalorder %s251, %s253
      %p260 = scmp.eq.s32.totalorder %s25, 1
      %p261 = por %p259, %p260
      %p262 = scmp.ne.s32.totalorder %s253, %s254
      %p263 = scmp.eq.s32.totalorder %s25, 0
      %p264 = por %p262, %p263
      %p265 = scmp.ne.s32.totalorder %s253, %s254
      %p266 = scmp.eq.s32.totalorder %s26, 1
      %p267 = por %p265, %p266
      %p269 = scmp.ne.s32.totalorder %s254, %s268
      %p270 = scmp.eq.s32.totalorder %s26, 0
      %p271 = por %p269, %p270
      %s273 = sadd.s32 %s272, 1
      %p276 = scmp.eq.s32.totalorder %s20, 1
      %p277 = scmp.ne.s32.totalorder %s272, %s274
      %p278 = scmp.eq.s32.totalorder %s20, 0
      %p279 = por %p277, %p278
      %p280 = scmp.ne.s32.totalorder %s272, %s274
      %p281 = scmp.eq.s32.totalorder %s25, 1
      %p282 = por %p280, %p281
      %p283 = scmp.ne.s32.totalorder %s274, %s275
      %p284 = scmp.eq.s32.totalorder %s25, 0
      %p285 = por %p283, %p284
      %p286 = scmp.ne.s32.totalorder %s274, %s275
      %p287 = scmp.eq.s32.totalorder %s26, 1
      %p288 = por %p286, %p287
      %p290 = scmp.ne.s32.totalorder %s275, %s289
      %p291 = scmp.eq.s32.totalorder %s26, 0
      %p292 = por %p290, %p291
      %s294 = sadd.s32 %s293, 1
      %p297 = scmp.eq.s32.totalorder %s20, 1
      %p298 = scmp.ne.s32.totalorder %s293, %s295
      %p299 = scmp.eq.s32.totalorder %s20, 0
      %p300 = por %p298, %p299
      %p301 = scmp.ne.s32.totalorder %s293, %s295
      %p302 = scmp.eq.s32.totalorder %s25, 1
      %p303 = por %p301, %p302
      %p304 = scmp.ne.s32.totalorder %s295, %s296
      %p305 = scmp.eq.s32.totalorder %s25, 0
      %p306 = por %p304, %p305
      %p307 = scmp.ne.s32.totalorder %s295, %s296
      %p308 = scmp.eq.s32.totalorder %s26, 1
      %p309 = por %p307, %p308
      %p311 = scmp.ne.s32.totalorder %s296, %s310
      %p312 = scmp.eq.s32.totalorder %s26, 0
      %p313 = por %p311, %p312
      %s315 = sadd.s32 %s314, 1
      %p318 = scmp.eq.s32.totalorder %s20, 1
      %p319 = scmp.ne.s32.totalorder %s314, %s316
      %p320 = scmp.eq.s32.totalorder %s20, 0
      %p321 = por %p319, %p320
      %p322 = scmp.ne.s32.totalorder %s314, %s316
      %p323 = scmp.eq.s32.totalorder %s25, 1
      %p324 = por %p322, %p323
      %p325 = scmp.ne.s32.totalorder %s316, %s317
      %p326 = scmp.eq.s32.totalorder %s25, 0
      %p327 = por %p325, %p326
      %p328 = scmp.ne.s32.totalorder %s316, %s317
      %p329 = scmp.eq.s32.totalorder %s26, 1
      %p330 = por %p328, %p329
      %p332 = scmp.ne.s32.totalorder %s317, %s331
      %p333 = scmp.eq.s32.totalorder %s26, 0
      %p334 = por %p332, %p333
      %s336 = sadd.s32 %s335, 1
      %p339 = scmp.eq.s32.totalorder %s20, 1
      %p340 = scmp.ne.s32.totalorder %s335, %s337
      %p341 = scmp.eq.s32.totalorder %s20, 0
      %p342 = por %p340, %p341
      %p343 = scmp.ne.s32.totalorder %s335, %s337
      %p344 = scmp.eq.s32.totalorder %s25, 1
      %p345 = por %p343, %p344
      %p346 = scmp.ne.s32.totalorder %s337, %s338
      %p347 = scmp.eq.s32.totalorder %s25, 0
      %p348 = por %p346, %p347
      %p349 = scmp.ne.s32.totalorder %s337, %s338
      %p350 = scmp.eq.s32.totalorder %s26, 1
      %p351 = por %p349, %p350
      %p353 = scmp.ne.s32.totalorder %s338, %s352
      %p354 = scmp.eq.s32.totalorder %s26, 0
      %p355 = por %p353, %p354
      %s356 = ssub.s32 %s28, %s35
      %s357 = ssub.s32 %s27, %s39
      %s358 = sor.u32 %s356, %s357
      %p359 = scmp.eq.s32.totalorder %s358, 0
      %s361 = sadd.s32 %s360, 1
      %s362 = scalar_select %p359, %s360, %s361
      %p365 = pneg %p359
      %p366 = scmp.eq.s32.totalorder %s20, 1
      %p367 = por %p365, %p366
      %p368 = scmp.ne.s32.totalorder %s360, %s363
      %p369 = scmp.eq.s32.totalorder %s20, 0
      %p370 = por %p368, %p369
      %p371 = scmp.ne.s32.totalorder %s360, %s363
      %p372 = scmp.eq.s32.totalorder %s25, 1
      %p373 = por %p371, %p372
      %p374 = scmp.ne.s32.totalorder %s363, %s364
      %p375 = scmp.eq.s32.totalorder %s25, 0
      %p376 = por %p374, %p375
      %p377 = scmp.ne.s32.totalorder %s363, %s364
      %p378 = scmp.eq.s32.totalorder %s26, 1
      %p379 = por %p377, %p378
      %p381 = scmp.ne.s32.totalorder %s364, %s380
      %p382 = scmp.eq.s32.totalorder %s26, 0
      %p383 = por %p381, %p382
      %p384 = scmp.le.s32.totalorder 1, %s20
      %p385 = scmp.lt.s32.totalorder %s20, 3
      %p386 = pnand %p384, %p385
      %p387 = pneg %p386
      // Predicated region
      $region9: #{fuxi_jagged_forward.5} parent=5 // pred_check
        _
      $region10: #{fuxi_jagged_forward.5} parent=5 // pred_check_branch
        %389 = sbr.rel (%p386) target = $region12
      $region11: #{fuxi_jagged_forward.5} parent=5 // pred_region
        %s390 = ssub.s32 %s20, 1
        // Predicated region
        $region13: #{fuxi_jagged_forward.5} parent=11 // pred_check
          %p391 = pneg %p112
        $region14: #{fuxi_jagged_forward.5} parent=11 // pred_check_branch
          %393 = sbr.rel (%p391) target = $region16
        $region15: #{fuxi_jagged_forward.5} parent=11 // pred_region
          %p394 = scmp.lt.s32.totalorder %s29, 0
          %s395 = scalar_select %p394, %s29, 0
          %s396 = smul.addr %s395, 4
          %s397 = scalar_lea.vmem %s2, %s396
        $region16: #{fuxi_jagged_forward.5} parent=11 // pred_fallthru
          _
        // Predicated region
        $region17: #{fuxi_jagged_forward.5} parent=11 // pred_check
          %p398 = pneg %p166
        $region18: #{fuxi_jagged_forward.5} parent=11 // pred_check_branch
          %400 = sbr.rel (%p398) target = $region20
        $region19: #{fuxi_jagged_forward.5} parent=11 // pred_region
          %p401 = scmp.lt.s32.totalorder %s29, 0
          %s402 = scalar_select %p401, %s29, 0
          %s403 = smul.addr %s402, 4
          %s404 = scalar_lea.vmem %s4, %s403
        $region20: #{fuxi_jagged_forward.5} parent=11 // pred_fallthru
          _
        // Predicated region
        $region21: #{fuxi_jagged_forward.5} parent=11 // pred_check
          %p405 = pneg %p187
        $region22: #{fuxi_jagged_forward.5} parent=11 // pred_check_branch
          %407 = sbr.rel (%p405) target = $region24
        $region23: #{fuxi_jagged_forward.5} parent=11 // pred_region
          %s409 = ssub.s32 16, 16
          %410 = vsyncadd [#allocation3], %s409
          %s412 = sshll.u32 %s5, 4
          %s413 = int_to_ptr.vmem [resolvable:$true] %s412
          %415 = dma.vmem_to_smem %s413, 16, [#allocation2], [#allocation3]
        $region24: #{fuxi_jagged_forward.5} parent=11 // pred_fallthru
          _
        // Predicated region
        $region25: #{fuxi_jagged_forward.5} parent=11 // pred_check
          %p416 = pneg %p264
        $region26: #{fuxi_jagged_forward.5} parent=11 // pred_check_branch
          %418 = sbr.rel (%p416) target = $region28
        $region27: #{fuxi_jagged_forward.5} parent=11 // pred_region
          _
        $region28: #{fuxi_jagged_forward.5} parent=11 // pred_fallthru
          _
        // Predicated region
        $region29: #{fuxi_jagged_forward.5} parent=11 // pred_check
          %p419 = pneg %p285
        $region30: #{fuxi_jagged_forward.5} parent=11 // pred_check_branch
          %421 = sbr.rel (%p419) target = $region32
        $region31: #{fuxi_jagged_forward.5} parent=11 // pred_region
          _
        $region32: #{fuxi_jagged_forward.5} parent=11 // pred_fallthru
          _
        // Predicated region
        $region33: #{fuxi_jagged_forward.5} parent=11 // pred_check
          %p422 = pneg %p306
        $region34: #{fuxi_jagged_forward.5} parent=11 // pred_check_branch
          %424 = sbr.rel (%p422) target = $region36
        $region35: #{fuxi_jagged_forward.5} parent=11 // pred_region
          _
        $region36: #{fuxi_jagged_forward.5} parent=11 // pred_fallthru
          _
        // Predicated region
        $region37: #{fuxi_jagged_forward.5} parent=11 // pred_check
          %p425 = pneg %p327
        $region38: #{fuxi_jagged_forward.5} parent=11 // pred_check_branch
          %427 = sbr.rel (%p425) target = $region40
        $region39: #{fuxi_jagged_forward.5} parent=11 // pred_region
          _
        $region40: #{fuxi_jagged_forward.5} parent=11 // pred_fallthru
          _
        // Predicated region
        $region41: #{fuxi_jagged_forward.5} parent=11 // pred_check
          %p428 = pneg %p348
        $region42: #{fuxi_jagged_forward.5} parent=11 // pred_check_branch
          %430 = sbr.rel (%p428) target = $region44
        $region43: #{fuxi_jagged_forward.5} parent=11 // pred_region
          _
        $region44: #{fuxi_jagged_forward.5} parent=11 // pred_fallthru
          _
      $region12: #{fuxi_jagged_forward.5} parent=5 // pred_fallthru
        _
      %p431 = scmp.lt.s32.totalorder %s20, 2
      // Predicated region
      $region45: #{fuxi_jagged_forward.5} parent=5 // pred_check
        %p432 = pneg %p431
      $region46: #{fuxi_jagged_forward.5} parent=5 // pred_check_branch
        %434 = sbr.rel (%p432) target = $region48
      $region47: #{fuxi_jagged_forward.5} parent=5 // pred_region
        // Predicated region
        $region49: #{fuxi_jagged_forward.5} parent=47 // pred_check
          %p435 = pneg %p54
        $region50: #{fuxi_jagged_forward.5} parent=47 // pred_check_branch
          %437 = sbr.rel (%p435) target = $region52
        $region51: #{fuxi_jagged_forward.5} parent=47 // pred_region
          %p438 = scmp.lt.s32.totalorder %s28, 1
          %s439 = scalar_select %p438, %s28, 1
          %p440 = scmp.lt.s32.totalorder %s27, 0
          %s441 = scalar_select %p440, %s27, 0
          %s442 = sadd.s32 %s441, %s439
          %s443 = smul.addr %s442, 4
          %s444 = scalar_lea.vmem %s0, %s443
        $region52: #{fuxi_jagged_forward.5} parent=47 // pred_fallthru
          _
        // Predicated region
        $region53: #{fuxi_jagged_forward.5} parent=47 // pred_check
          %p445 = pneg %p80
        $region54: #{fuxi_jagged_forward.5} parent=47 // pred_check_branch
          %447 = sbr.rel (%p445) target = $region56
        $region55: #{fuxi_jagged_forward.5} parent=47 // pred_region
          %p448 = scmp.lt.s32.totalorder %s28, 1
          %s449 = scalar_select %p448, %s28, 1
          %s450 = smul.addr %s449, 4
          %s451 = scalar_lea.vmem %s1, %s450
        $region56: #{fuxi_jagged_forward.5} parent=47 // pred_fallthru
          _
        // Predicated region
        $region57: #{fuxi_jagged_forward.5} parent=47 // pred_check
          %p452 = pneg %p134
        $region58: #{fuxi_jagged_forward.5} parent=47 // pred_check_branch
          %454 = sbr.rel (%p452) target = $region60
        $region59: #{fuxi_jagged_forward.5} parent=47 // pred_region
          %p455 = scmp.lt.s32.totalorder %s28, 1
          %s456 = scalar_select %p455, %s28, 1
          %p457 = scmp.lt.s32.totalorder %s27, 0
          %s458 = scalar_select %p457, %s27, 0
          %s459 = sadd.s32 %s458, %s456
          %s460 = smul.addr %s459, 8
          %s461 = scalar_lea.vmem %s3, %s460
        $region60: #{fuxi_jagged_forward.5} parent=47 // pred_fallthru
          _
        // Predicated region
        $region61: #{fuxi_jagged_forward.5} parent=47 // pred_check
          %p462 = pneg %p209
        $region62: #{fuxi_jagged_forward.5} parent=47 // pred_check_branch
          %464 = sbr.rel (%p462) target = $region64
        $region63: #{fuxi_jagged_forward.5} parent=47 // pred_region
          %p465 = scmp.lt.s32.totalorder %s28, 1
          %s466 = scalar_select %p465, %s28, 1
          %p467 = scmp.lt.s32.totalorder %s27, 0
          %s468 = scalar_select %p467, %s27, 0
          %s469 = sadd.s32 %s468, %s466
          %s470 = smul.addr %s469, 4
          %s471 = scalar_lea.vmem %s6, %s470
        $region64: #{fuxi_jagged_forward.5} parent=47 // pred_fallthru
          _
        // Predicated region
        $region65: #{fuxi_jagged_forward.5} parent=47 // pred_check
          %p472 = pneg %p237
        $region66: #{fuxi_jagged_forward.5} parent=47 // pred_check_branch
          %474 = sbr.rel (%p472) target = $region68
        $region67: #{fuxi_jagged_forward.5} parent=47 // pred_region
          %p475 = scmp.lt.s32.totalorder %s28, 1
          %s476 = scalar_select %p475, %s28, 1
          %p477 = scmp.lt.s32.totalorder %s27, 0
          %s478 = scalar_select %p477, %s27, 0
          %s479 = sadd.s32 %s478, %s476
          %s480 = smul.addr %s479, 8
          %s481 = scalar_lea.vmem %s7, %s480
        $region68: #{fuxi_jagged_forward.5} parent=47 // pred_fallthru
          _
      $region48: #{fuxi_jagged_forward.5} parent=5 // pred_fallthru
        _
      %p482 = scmp.le.s32.totalorder 1, %s20
      %p483 = scmp.lt.s32.totalorder %s20, 3
      %p484 = pnand %p482, %p483
      %p485 = pneg %p484
      // Predicated region
      $region69: #{fuxi_jagged_forward.5} parent=5 // pred_check
        _
      $region70: #{fuxi_jagged_forward.5} parent=5 // pred_check_branch
        %487 = sbr.rel (%p484) target = $region72
      $region71: #{fuxi_jagged_forward.5} parent=5 // pred_region
        %s488 = ssub.s32 %s20, 1
        // Predicated region
        $region73: #{fuxi_jagged_forward.5} parent=71 // pred_check
          %p489 = pneg %p187
        $region74: #{fuxi_jagged_forward.5} parent=71 // pred_check_branch
          %491 = sbr.rel (%p489) target = $region76
        $region75: #{fuxi_jagged_forward.5} parent=71 // pred_region
          %492 = dma.done [#allocation3], 16
        $region76: #{fuxi_jagged_forward.5} parent=71 // pred_fallthru
          _
        %493 = sfence
        %p494 = scmp.lt.s32.totalorder %s30, 1
        %s495 = scalar_select %p494, %s30, 1
        %p496 = scmp.lt.s32.totalorder %s29, 0
        %s497 = scalar_select %p496, %s29, 0
        %s498 = sadd.s32 %s497, %s495
        %s499 = smul.addr %s498, 4
        %s500 = scalar_lea.vmem %s0, %s499
        %p501 = pneg %p60
        %p502 = pneg %p57
        %p503 = scmp.lt.s32.totalorder %s30, 1
        %s504 = scalar_select %p503, %s30, 1
        %s505 = smul.addr %s504, 4
        %s506 = scalar_lea.vmem %s1, %s505
        %p507 = pneg %p86
        %p508 = pneg %p83
        %p509 = scmp.lt.s32.totalorder %s29, 0
        %s510 = scalar_select %p509, %s29, 0
        %s511 = smul.addr %s510, 4
        %s512 = scalar_lea.vmem %s2, %s511
        %p513 = pneg %p112
        %p514 = pneg %p109
        %p515 = scmp.lt.s32.totalorder %s30, 1
        %s516 = scalar_select %p515, %s30, 1
        %p517 = scmp.lt.s32.totalorder %s29, 0
        %s518 = scalar_select %p517, %s29, 0
        %s519 = sadd.s32 %s518, %s516
        %s520 = smul.addr %s519, 8
        %s521 = scalar_lea.vmem %s3, %s520
        %p522 = pneg %p140
        %p523 = pneg %p137
        %p524 = scmp.lt.s32.totalorder %s29, 0
        %s525 = scalar_select %p524, %s29, 0
        %s526 = smul.addr %s525, 4
        %s527 = scalar_lea.vmem %s4, %s526
        %p528 = pneg %p166
        %p529 = pneg %p163
        %p530 = pneg %p187
        %p531 = pneg %p184
        %p532 = scmp.lt.s32.totalorder %s30, 1
        %s533 = scalar_select %p532, %s30, 1
        %p534 = scmp.lt.s32.totalorder %s29, 0
        %s535 = scalar_select %p534, %s29, 0
        %s536 = sadd.s32 %s535, %s533
        %s537 = smul.addr %s536, 4
        %s538 = scalar_lea.vmem %s6, %s537
        %p539 = pneg %p215
        %p540 = pneg %p212
        %p541 = scmp.lt.s32.totalorder %s30, 1
        %s542 = scalar_select %p541, %s30, 1
        %p543 = scmp.lt.s32.totalorder %s29, 0
        %s544 = scalar_select %p543, %s29, 0
        %s545 = sadd.s32 %s544, %s542
        %s546 = smul.addr %s545, 8
        %s547 = scalar_lea.vmem %s7, %s546
        %p548 = pneg %p243
        %p549 = pneg %p240
        %p550 = pneg %p264
        %p551 = pneg %p261
        %p552 = pneg %p285
        %p553 = pneg %p282
        %p554 = pneg %p306
        %p555 = pneg %p303
        %p556 = pneg %p327
        %p557 = pneg %p324
        %p558 = pneg %p348
        %p559 = pneg %p345
        %p560 = pneg %p376
        %p561 = pneg %p373
        %p562 = scmp.lt.s32.totalorder %s30, 1
        %s563 = scalar_select %p562, %s30, 1
        %p564 = scmp.lt.s32.totalorder %s29, 0
        %s565 = scalar_select %p564, %s29, 0
        %s566 = sadd.s32 %s565, %s563
        %s567 = smul.addr %s566, 4
        %s568 = scalar_lea.vmem %s13, %s567
        %p569 = scmp.lt.s32.totalorder %s30, 1
        %s570 = scalar_select %p569, %s30, 1
        %p571 = scmp.lt.s32.totalorder %s29, 0
        %s572 = scalar_select %p571, %s29, 0
        %s573 = sadd.s32 %s572, %s570
        %s574 = smul.addr %s573, 4
        %s575 = scalar_lea.vmem %s0, %s574
        %p576 = scmp.lt.s32.totalorder %s30, 1
        %s577 = scalar_select %p576, %s30, 1
        %s578 = smul.addr %s577, 4
        %s579 = scalar_lea.vmem %s1, %s578
        %p580 = scmp.lt.s32.totalorder %s29, 0
        %s581 = scalar_select %p580, %s29, 0
        %s582 = smul.addr %s581, 4
        %s583 = scalar_lea.vmem %s2, %s582
        %p584 = scmp.lt.s32.totalorder %s30, 1
        %s585 = scalar_select %p584, %s30, 1
        %p586 = scmp.lt.s32.totalorder %s29, 0
        %s587 = scalar_select %p586, %s29, 0
        %s588 = sadd.s32 %s587, %s585
        %s589 = smul.addr %s588, 8
        %s590 = scalar_lea.vmem %s3, %s589
        %p591 = scmp.lt.s32.totalorder %s29, 0
        %s592 = scalar_select %p591, %s29, 0
        %s593 = smul.addr %s592, 4
        %s594 = scalar_lea.vmem %s4, %s593
        %p595 = scmp.lt.s32.totalorder %s30, 1
        %s596 = scalar_select %p595, %s30, 1
        %p597 = scmp.lt.s32.totalorder %s29, 0
        %s598 = scalar_select %p597, %s29, 0
        %s599 = sadd.s32 %s598, %s596
        %s600 = smul.addr %s599, 4
        %s601 = scalar_lea.vmem %s6, %s600
        %p602 = scmp.lt.s32.totalorder %s30, 1
        %s603 = scalar_select %p602, %s30, 1
        %p604 = scmp.lt.s32.totalorder %s29, 0
        %s605 = scalar_select %p604, %s29, 0
        %s606 = sadd.s32 %s605, %s603
        %s607 = smul.addr %s606, 8
        %s608 = scalar_lea.vmem %s7, %s607
        %p609 = scmp.lt.s32.totalorder %s30, 1
        %s610 = scalar_select %p609, %s30, 1
        %p611 = scmp.lt.s32.totalorder %s29, 0
        %s612 = scalar_select %p611, %s29, 0
        %s613 = sadd.s32 %s612, %s610
        %s614 = smul.addr %s613, 4
        %s615 = scalar_lea.vmem %s13, %s614
        %v617 = vld [vmem:[%s594] sm:$0xf]
        %v618 = vunpack.c.l.bf16 %v617
        %v619 = vld [vmem:[%s579] sm:$0xf]
        %v620 = vld [vmem:[%s575] sm:$0xf]
        %v621 = vunpack.c.l.bf16 %v620
        %v622 = vld [vmem:[%s583] sm:$0xf]
        %vm623 = vcmask 64512
        %v625 = vsel %vm623, %v622, 0
        %vm627 = vcmask 1043456
        %v629 = vsel %vm627, %v619, 0
        %631 = vmatprep.subr.bf16.mxu0 0
        %632 = vmatpush1.bf16.msra.mxu0 0
        %633 = vmatprep.subr.bf16.mxu0 0
        %634 = vmatpush1.bf16.msra.mxu0 0
        %635 = vmatprep.subr.bf16.mxu0 0
        %636 = vmatpush1.bf16.msra.mxu0 0
        %637 = vmatprep.subr.bf16.mxu0 0
        %638 = vmatpush1.bf16.msra.mxu0 0
        %639 = vmatprep.subr.bf16.mxu0 0
        %640 = vmatpush1.bf16.msra.mxu0 0
        %641 = vmatprep.subr.bf16.mxu0 0
        %642 = vmatpush1.bf16.msra.mxu0 0
        %643 = vmatprep.subr.bf16.mxu0 0
        %644 = vmatpush1.bf16.msra.mxu0 0
        %645 = vmatprep.subr.bf16.mxu0 0
        %646 = vmatpush1.bf16.msra.mxu0 %v629
        %647 = vmatprep.subr.bf16.mxu0 0
        %648 = vmatpush2.bf16.msra.mxu0 0
        %649 = vmatprep.subr.bf16.mxu0 0
        %650 = vmatpush2.bf16.msra.mxu0 0
        %651 = vmatprep.subr.bf16.mxu0 0
        %652 = vmatpush2.bf16.msra.mxu0 0
        %653 = vmatprep.subr.bf16.mxu0 0
        %654 = vmatpush2.bf16.msra.mxu0 0
        %655 = vmatprep.subr.bf16.mxu0 0
        %656 = vmatpush2.bf16.msra.mxu0 0
        %657 = vmatprep.subr.bf16.mxu0 0
        %658 = vmatpush2.bf16.msra.mxu0 0
        %659 = vmatprep.subr.bf16.mxu0 0
        %660 = vmatpush2.bf16.msra.mxu0 0
        %661 = vmatprep.subr.bf16.mxu0 0
        %662 = vmatpush2.bf16.msra.mxu0 0
        %663 = vmatprep.mubr.bf16.mxu0 0
        %664 = vmatmul.mubr.bf16.gmra.mxu0 %v625
        %v665 = vpop.f32.mrf.mxu0
        %v666 = vadd.f32 0.0, %v665
        %v667 = vpop.f32.mrf.mxu0
        %v668 = vpop.f32.mrf.mxu0
        %v669 = vpop.f32.mrf.mxu0
        %670 = vdwg.mxu0
        %v671 = vld [vmem:[%s590] sm:$0xff]
        %s672 = sld [smem:[#allocation2]]
        %v673 = vstv %s672
        %vm674 = vcmp.eq.s32.totalorder %v671, 1
        %s675 = sld [smem:[#allocation2 + $0x1]]
        %v676 = vstv %s675
        %v677 = vsel %vm674, %v676, %v673
        %vm678 = vcmp.eq.s32.totalorder %v671, 2
        %s679 = sld [smem:[#allocation2 + $0x2]]
        %v680 = vstv %s679
        %v681 = vsel %vm678, %v680, %v677
        %vm682 = vcmp.eq.s32.totalorder %v671, 3
        %s683 = sld [smem:[#allocation2 + $0x3]]
        %v684 = vstv %s683
        %v685 = vsel %vm682, %v684, %v681
        %vm686 = vcmp.eq.s32.totalorder %v671, 4
        %s687 = sld [smem:[#allocation2 + $0x4]]
        %v688 = vstv %s687
        %v689 = vsel %vm686, %v688, %v685
        %vm690 = vcmp.eq.s32.totalorder %v671, 5
        %s691 = sld [smem:[#allocation2 + $0x5]]
        %v692 = vstv %s691
        %v693 = vsel %vm690, %v692, %v689
        %vm694 = vcmp.eq.s32.totalorder %v671, 6
        %s695 = sld [smem:[#allocation2 + $0x6]]
        %v696 = vstv %s695
        %v697 = vsel %vm694, %v696, %v693
        %vm698 = vcmp.eq.s32.totalorder %v671, 7
        %s699 = sld [smem:[#allocation2 + $0x7]]
        %v700 = vstv %s699
        %v701 = vsel %vm698, %v700, %v697
        %vm702 = vcmp.eq.s32.totalorder %v671, 8
        %s703 = sld [smem:[#allocation2 + $0x8]]
        %v704 = vstv %s703
        %v705 = vsel %vm702, %v704, %v701
        %vm706 = vcmp.eq.s32.totalorder %v671, 9
        %s707 = sld [smem:[#allocation2 + $0x9]]
        %v708 = vstv %s707
        %v709 = vsel %vm706, %v708, %v705
        %vm710 = vcmp.eq.s32.totalorder %v671, 10
        %s711 = sld [smem:[#allocation2 + $0xa]]
        %v712 = vstv %s711
        %v713 = vsel %vm710, %v712, %v709
        %vm714 = vcmp.eq.s32.totalorder %v671, 11
        %s715 = sld [smem:[#allocation2 + $0xb]]
        %v716 = vstv %s715
        %v717 = vsel %vm714, %v716, %v713
        %vm718 = vcmp.eq.s32.totalorder %v671, 12
        %s719 = sld [smem:[#allocation2 + $0xc]]
        %v720 = vstv %s719
        %v721 = vsel %vm718, %v720, %v717
        %vm722 = vcmp.eq.s32.totalorder %v671, 13
        %s723 = sld [smem:[#allocation2 + $0xd]]
        %v724 = vstv %s723
        %v725 = vsel %vm722, %v724, %v721
        %vm726 = vcmp.eq.s32.totalorder %v671, 14
        %s727 = sld [smem:[#allocation2 + $0xe]]
        %v728 = vstv %s727
        %v729 = vsel %vm726, %v728, %v725
        %vm730 = vcmp.eq.s32.totalorder %v671, 15
        %s731 = sld [smem:[#allocation2 + $0xf]]
        %v732 = vstv %s731
        %v733 = vsel %vm730, %v732, %v729
        %v734 = vmul.f32 %v733, %v618
        %v735 = vpack.c.bf16 %v734, %v734
        %v737 = vsel %vm623, %v735, 0
        %739 = vmatprep.subr.bf16.mxu0 0
        %740 = vmatpush1.bf16.msra.mxu0 0
        %741 = vmatprep.subr.bf16.mxu0 0
        %742 = vmatpush1.bf16.msra.mxu0 0
        %743 = vmatprep.subr.bf16.mxu0 0
        %744 = vmatpush1.bf16.msra.mxu0 0
        %745 = vmatprep.subr.bf16.mxu0 0
        %746 = vmatpush1.bf16.msra.mxu0 0
        %747 = vmatprep.subr.bf16.mxu0 0
        %748 = vmatpush1.bf16.msra.mxu0 0
        %749 = vmatprep.subr.bf16.mxu0 0
        %750 = vmatpush1.bf16.msra.mxu0 0
        %751 = vmatprep.subr.bf16.mxu0 0
        %752 = vmatpush1.bf16.msra.mxu0 0
        %753 = vmatprep.subr.bf16.mxu0 0
        %754 = vmatpush1.bf16.msra.mxu0 %v629
        %755 = vmatprep.subr.bf16.mxu0 0
        %756 = vmatpush2.bf16.msra.mxu0 0
        %757 = vmatprep.subr.bf16.mxu0 0
        %758 = vmatpush2.bf16.msra.mxu0 0
        %759 = vmatprep.subr.bf16.mxu0 0
        %760 = vmatpush2.bf16.msra.mxu0 0
        %761 = vmatprep.subr.bf16.mxu0 0
        %762 = vmatpush2.bf16.msra.mxu0 0
        %763 = vmatprep.subr.bf16.mxu0 0
        %764 = vmatpush2.bf16.msra.mxu0 0
        %765 = vmatprep.subr.bf16.mxu0 0
        %766 = vmatpush2.bf16.msra.mxu0 0
        %767 = vmatprep.subr.bf16.mxu0 0
        %768 = vmatpush2.bf16.msra.mxu0 0
        %769 = vmatprep.subr.bf16.mxu0 0
        %770 = vmatpush2.bf16.msra.mxu0 0
        %771 = vmatprep.mubr.bf16.mxu0 0
        %772 = vmatmul.mubr.bf16.gmra.mxu0 %v737
        %v773 = vpop.f32.mrf.mxu0
        %v774 = vadd.f32 0.0, %v773
        %v775 = vpop.f32.mrf.mxu0
        %v776 = vpop.f32.mrf.mxu0
        %v777 = vpop.f32.mrf.mxu0
        %778 = vdwg.mxu0
        %v779 = vmul.f32 %v666, %v666
        %vm780 = vcmask 261120
        %v781 = vsel %vm780, %v779, 0.0
        %782 = vadd.xlane.f32.xlu0 %v781
        %v783 = vpop.xlane.xlu0 %782
        %v784 = vmul.f32 %v774, %v774
        %v785 = vsel %vm780, %v784, 0.0
        %786 = vadd.xlane.f32.xlu0 %v785
        %v787 = vpop.xlane.xlu0 %786
        %v788 = vadd.f32 %v783, %v787
        %v789 = vmul.f32 %v621, %v666
        %v790 = vpack.c.bf16 %v789, %v789
        %v791 = vld [vmem:[%s8] sm:$0xf]
        %v792 = vld [vmem:[%s8 + $0x4] sm:$0xf]
        %v793 = vld [vmem:[%s8 + $0x8] sm:$0xf]
        %v794 = vld [vmem:[%s8 + $0xc] sm:$0xf]
        %796 = vrot.lane.b32.xlu0 %v774, 32
        %v797 = vpop.permute.xlu0 %796
        %v799 = vmul.f32 %v621, %v797
        %v800 = vpack.c.bf16 %v799, %v799
        %v801 = vld [vmem:[%s8 + $0x10] sm:$0xf]
        %v802 = vld [vmem:[%s8 + $0x14] sm:$0xf]
        %v803 = vld [vmem:[%s8 + $0x18] sm:$0xf]
        %v804 = vld [vmem:[%s8 + $0x1c] sm:$0xf]
        %806 = vrot.lane.b32.xlu0 %v800, 96
        %v807 = vpop.permute.xlu0 %806
        %v812 = vunpack.c.l.b16 %v801
        %v813 = vunpack.c.l.b16 %v802
        %v814 = vunpack.c.l.b16 %v803
        %v815 = vunpack.c.l.b16 %v804
        %v816 = vpack.c.b16 %v813, %v812
        %v817 = vpack.c.b16 %v815, %v814
        %v821 = vsel %vm780, %v807, 0
        %823 = vmatprep.subr.bf16.mxu0 0
        %824 = vmatpush1.bf16.msra.mxu0 0
        %825 = vmatprep.subr.bf16.mxu0 0
        %826 = vmatpush1.bf16.msra.mxu0 0
        %827 = vmatprep.subr.bf16.mxu0 0
        %828 = vmatpush1.bf16.msra.mxu0 0
        %829 = vmatprep.subr.bf16.mxu0 0
        %830 = vmatpush1.bf16.msra.mxu0 0
        %831 = vmatprep.subr.bf16.mxu0 0
        %832 = vmatpush1.bf16.msra.mxu0 0
        %833 = vmatprep.subr.bf16.mxu0 0
        %834 = vmatpush1.bf16.msra.mxu0 0
        %835 = vmatprep.subr.bf16.mxu0 0
        %836 = vmatpush1.bf16.msra.mxu0 %v817
        %837 = vmatprep.subr.bf16.mxu0 0
        %838 = vmatpush1.bf16.msra.mxu0 %v816
        %839 = vmatprep.subr.bf16.mxu0 0
        %840 = vmatpush2.bf16.msra.mxu0 0
        %841 = vmatprep.subr.bf16.mxu0 0
        %842 = vmatpush2.bf16.msra.mxu0 0
        %843 = vmatprep.subr.bf16.mxu0 0
        %844 = vmatpush2.bf16.msra.mxu0 0
        %845 = vmatprep.subr.bf16.mxu0 0
        %846 = vmatpush2.bf16.msra.mxu0 0
        %847 = vmatprep.subr.bf16.mxu0 0
        %848 = vmatpush2.bf16.msra.mxu0 0
        %849 = vmatprep.subr.bf16.mxu0 0
        %850 = vmatpush2.bf16.msra.mxu0 0
        %851 = vmatprep.subr.bf16.mxu0 0
        %852 = vmatpush2.bf16.msra.mxu0 0
        %853 = vmatprep.subr.bf16.mxu0 0
        %854 = vmatpush2.bf16.msra.mxu0 0
        %855 = vmatprep.mubr.bf16.mxu0 0
        %856 = vmatmul.mubr.bf16.gmra.mxu0 %v821
        %v857 = vpop.f32.mrf.mxu0
        %v858 = vadd.f32 0.0, %v857
        %v859 = vpop.f32.mrf.mxu0
        %v860 = vpop.f32.mrf.mxu0
        %v861 = vpop.f32.mrf.mxu0
        %862 = vdwg.mxu0
        %v867 = vunpack.c.l.b16 %v791
        %v868 = vunpack.c.l.b16 %v792
        %v869 = vunpack.c.l.b16 %v793
        %v870 = vunpack.c.l.b16 %v794
        %v871 = vpack.c.b16 %v868, %v867
        %v872 = vpack.c.b16 %v870, %v869
        %v876 = vsel %vm780, %v790, 0
        %878 = vmatprep.subr.bf16.mxu0 0
        %879 = vmatpush1.bf16.msra.mxu0 0
        %880 = vmatprep.subr.bf16.mxu0 0
        %881 = vmatpush1.bf16.msra.mxu0 0
        %882 = vmatprep.subr.bf16.mxu0 0
        %883 = vmatpush1.bf16.msra.mxu0 0
        %884 = vmatprep.subr.bf16.mxu0 0
        %885 = vmatpush1.bf16.msra.mxu0 0
        %886 = vmatprep.subr.bf16.mxu0 0
        %887 = vmatpush1.bf16.msra.mxu0 0
        %888 = vmatprep.subr.bf16.mxu0 0
        %889 = vmatpush1.bf16.msra.mxu0 0
        %890 = vmatprep.subr.bf16.mxu0 0
        %891 = vmatpush1.bf16.msra.mxu0 %v872
        %892 = vmatprep.subr.bf16.mxu0 0
        %893 = vmatpush1.bf16.msra.mxu0 %v871
        %894 = vmatprep.subr.bf16.mxu0 0
        %895 = vmatpush2.bf16.msra.mxu0 0
        %896 = vmatprep.subr.bf16.mxu0 0
        %897 = vmatpush2.bf16.msra.mxu0 0
        %898 = vmatprep.subr.bf16.mxu0 0
        %899 = vmatpush2.bf16.msra.mxu0 0
        %900 = vmatprep.subr.bf16.mxu0 0
        %901 = vmatpush2.bf16.msra.mxu0 0
        %902 = vmatprep.subr.bf16.mxu0 0
        %903 = vmatpush2.bf16.msra.mxu0 0
        %904 = vmatprep.subr.bf16.mxu0 0
        %905 = vmatpush2.bf16.msra.mxu0 0
        %906 = vmatprep.subr.bf16.mxu0 0
        %907 = vmatpush2.bf16.msra.mxu0 0
        %908 = vmatprep.subr.bf16.mxu0 0
        %909 = vmatpush2.bf16.msra.mxu0 0
        %910 = vmatprep.mubr.bf16.mxu0 0
        %911 = vmatmul.mubr.bf16.gmra.mxu0 %v876
        %v912 = vpop.f32.mrf.mxu0
        %v913 = vadd.f32 %v858, %v912
        %v914 = vpop.f32.mrf.mxu0
        %v915 = vpop.f32.mrf.mxu0
        %v916 = vpop.f32.mrf.mxu0
        %917 = vdwg.mxu0
        %v919 = vunpack.c.l.b16 %v620
        %v920 = vpack.c.b16 %v919, %v919
        %921 = vrot.lane.b32.xlu0 %v920, 32
        %v922 = vpop.permute.xlu0 %921
        %v924 = vunpack.c.l.b16 %v619
        %v925 = vpack.c.b16 %v924, %v924
        %926 = vrot.lane.b32.xlu0 %v925, 96
        %v927 = vpop.permute.xlu0 %926
        %vm928 = vcmask 130048
        %v930 = vsel %vm928, %v922, 0
        %v933 = vsel %vm928, %v927, 0
        %935 = vmatprep.subr.bf16.mxu0 0
        %936 = vmatpush1.bf16.xpose.msra.mxu0 0
        %937 = vmatprep.subr.bf16.mxu0 0
        %938 = vmatpush1.bf16.xpose.msra.mxu0 0
        %939 = vmatprep.subr.bf16.mxu0 0
        %940 = vmatpush1.bf16.xpose.msra.mxu0 0
        %941 = vmatprep.subr.bf16.mxu0 0
        %942 = vmatpush1.bf16.xpose.msra.mxu0 0
        %943 = vmatprep.subr.bf16.mxu0 0
        %944 = vmatpush1.bf16.xpose.msra.mxu0 0
        %945 = vmatprep.subr.bf16.mxu0 0
        %946 = vmatpush1.bf16.xpose.msra.mxu0 0
        %947 = vmatprep.subr.bf16.mxu0 0
        %948 = vmatpush1.bf16.xpose.msra.mxu0 0
        %949 = vmatprep.subr.bf16.mxu0 0
        %950 = vmatpush1.bf16.xpose.msra.mxu0 %v933
        %951 = vmatprep.subr.bf16.mxu0 0
        %952 = vmatpush2.bf16.xpose.msra.mxu0 0
        %953 = vmatprep.subr.bf16.mxu0 0
        %954 = vmatpush2.bf16.xpose.msra.mxu0 0
        %955 = vmatprep.subr.bf16.mxu0 0
        %956 = vmatpush2.bf16.xpose.msra.mxu0 0
        %957 = vmatprep.subr.bf16.mxu0 0
        %958 = vmatpush2.bf16.xpose.msra.mxu0 0
        %959 = vmatprep.subr.bf16.mxu0 0
        %960 = vmatpush2.bf16.xpose.msra.mxu0 0
        %961 = vmatprep.subr.bf16.mxu0 0
        %962 = vmatpush2.bf16.xpose.msra.mxu0 0
        %963 = vmatprep.subr.bf16.mxu0 0
        %964 = vmatpush2.bf16.xpose.msra.mxu0 0
        %965 = vmatprep.subr.bf16.mxu0 0
        %966 = vmatpush2.bf16.xpose.msra.mxu0 0
        %967 = vmatprep.mubr.bf16.mxu0 0
        %968 = vmatmul.mubr.bf16.gmra.mxu0 %v930
        %v969 = vpop.f32.mrf.mxu0
        %v970 = vadd.f32 0.0, %v969
        %v971 = vpop.f32.mrf.mxu0
        %v972 = vpop.f32.mrf.mxu0
        %v973 = vpop.f32.mrf.mxu0
        %974 = vdwg.mxu0
        %v975 = vxor.u32 %v970, 2147483648
        %v976 = vmul.f32 %v975, 1.442695
        %v977 = vpow.pop %v976
        %v978 = vadd.f32 %v977, 1.0
        %v979 = vrcp.pop %v978
        %v980 = vmul.f32 1.0, %v979
        %v981 = vmul.f32 %v970, %v980
        %v982 = vmul.f32 %v981, 0.125
        %v983 = vmul.f32 %v982, %v618
        %v984 = vpack.c.bf16 %v983, %v983
        %v986 = vsel %vm623, %v984, 0
        %988 = vmatprep.subr.bf16.mxu0 0
        %989 = vmatpush1.bf16.msra.mxu0 0
        %990 = vmatprep.subr.bf16.mxu0 0
        %991 = vmatpush1.bf16.msra.mxu0 0
        %992 = vmatprep.subr.bf16.mxu0 0
        %993 = vmatpush1.bf16.msra.mxu0 0
        %994 = vmatprep.subr.bf16.mxu0 0
        %995 = vmatpush1.bf16.msra.mxu0 0
        %996 = vmatprep.subr.bf16.mxu0 0
        %997 = vmatpush1.bf16.msra.mxu0 0
        %998 = vmatprep.subr.bf16.mxu0 0
        %999 = vmatpush1.bf16.msra.mxu0 0
        %1000 = vmatprep.subr.bf16.mxu0 0
        %1001 = vmatpush1.bf16.msra.mxu0 0
        %1002 = vmatprep.subr.bf16.mxu0 0
        %1003 = vmatpush1.bf16.msra.mxu0 %v629
        %1004 = vmatprep.subr.bf16.mxu0 0
        %1005 = vmatpush2.bf16.msra.mxu0 0
        %1006 = vmatprep.subr.bf16.mxu0 0
        %1007 = vmatpush2.bf16.msra.mxu0 0
        %1008 = vmatprep.subr.bf16.mxu0 0
        %1009 = vmatpush2.bf16.msra.mxu0 0
        %1010 = vmatprep.subr.bf16.mxu0 0
        %1011 = vmatpush2.bf16.msra.mxu0 0
        %1012 = vmatprep.subr.bf16.mxu0 0
        %1013 = vmatpush2.bf16.msra.mxu0 0
        %1014 = vmatprep.subr.bf16.mxu0 0
        %1015 = vmatpush2.bf16.msra.mxu0 0
        %1016 = vmatprep.subr.bf16.mxu0 0
        %1017 = vmatpush2.bf16.msra.mxu0 0
        %1018 = vmatprep.subr.bf16.mxu0 0
        %1019 = vmatpush2.bf16.msra.mxu0 0
        %1020 = vmatprep.mubr.bf16.mxu0 0
        %1021 = vmatmul.mubr.bf16.gmra.mxu0 %v986
        %v1022 = vpop.f32.mrf.mxu0
        %v1023 = vadd.f32 0.0, %v1022
        %v1024 = vpop.f32.mrf.mxu0
        %v1025 = vpop.f32.mrf.mxu0
        %v1026 = vpop.f32.mrf.mxu0
        %1027 = vdwg.mxu0
        %v1028 = vmul.f32 %v1023, %v1023
        %v1029 = vsel %vm928, %v1028, 0.0
        %1030 = vadd.xlane.f32.xlu0 %v1029
        %v1031 = vpop.xlane.xlu0 %1030
        %v1032 = vadd.f32 %v788, %v1031
        %1034 = vrot.lane.b32.xlu0 %v1023, 64
        %v1035 = vpop.permute.xlu0 %1034
        %v1037 = vmul.f32 %v621, %v1035
        %v1038 = vpack.c.bf16 %v1037, %v1037
        %v1039 = vld [vmem:[%s8 + $0x20] sm:$0xf]
        %v1040 = vld [vmem:[%s8 + $0x24] sm:$0xf]
        %1042 = vrot.lane.b32.xlu0 %v1038, 64
        %v1043 = vpop.permute.xlu0 %1042
        %v1046 = vunpack.c.l.b16 %v1039
        %v1047 = vunpack.c.l.b16 %v1040
        %v1048 = vpack.c.b16 %v1047, %v1046
        %v1051 = vsel %vm928, %v1043, 0
        %1053 = vmatprep.subr.bf16.mxu0 0
        %1054 = vmatpush1.bf16.msra.mxu0 0
        %1055 = vmatprep.subr.bf16.mxu0 0
        %1056 = vmatpush1.bf16.msra.mxu0 0
        %1057 = vmatprep.subr.bf16.mxu0 0
        %1058 = vmatpush1.bf16.msra.mxu0 0
        %1059 = vmatprep.subr.bf16.mxu0 0
        %1060 = vmatpush1.bf16.msra.mxu0 0
        %1061 = vmatprep.subr.bf16.mxu0 0
        %1062 = vmatpush1.bf16.msra.mxu0 0
        %1063 = vmatprep.subr.bf16.mxu0 0
        %1064 = vmatpush1.bf16.msra.mxu0 0
        %1065 = vmatprep.subr.bf16.mxu0 0
        %1066 = vmatpush1.bf16.msra.mxu0 0
        %1067 = vmatprep.subr.bf16.mxu0 0
        %1068 = vmatpush1.bf16.msra.mxu0 %v1048
        %1069 = vmatprep.subr.bf16.mxu0 0
        %1070 = vmatpush2.bf16.msra.mxu0 0
        %1071 = vmatprep.subr.bf16.mxu0 0
        %1072 = vmatpush2.bf16.msra.mxu0 0
        %1073 = vmatprep.subr.bf16.mxu0 0
        %1074 = vmatpush2.bf16.msra.mxu0 0
        %1075 = vmatprep.subr.bf16.mxu0 0
        %1076 = vmatpush2.bf16.msra.mxu0 0
        %1077 = vmatprep.subr.bf16.mxu0 0
        %1078 = vmatpush2.bf16.msra.mxu0 0
        %1079 = vmatprep.subr.bf16.mxu0 0
        %1080 = vmatpush2.bf16.msra.mxu0 0
        %1081 = vmatprep.subr.bf16.mxu0 0
        %1082 = vmatpush2.bf16.msra.mxu0 0
        %1083 = vmatprep.subr.bf16.mxu0 0
        %1084 = vmatpush2.bf16.msra.mxu0 0
        %1085 = vmatprep.mubr.bf16.mxu0 0
        %1086 = vmatmul.mubr.bf16.gmra.mxu0 %v1051
        %v1087 = vpop.f32.mrf.mxu0
        %v1088 = vadd.f32 0.0, %v1087
        %v1089 = vpop.f32.mrf.mxu0
        %v1090 = vpop.f32.mrf.mxu0
        %v1091 = vpop.f32.mrf.mxu0
        %1092 = vdwg.mxu0
        %v1093 = vadd.f32 %v913, %v1088
        %1094 = vrot.lane.b32.xlu0 %v920, 16
        %v1095 = vpop.permute.xlu0 %1094
        %1096 = vrot.lane.b32.xlu0 %v925, 80
        %v1097 = vpop.permute.xlu0 %1096
        %v1099 = vsel %vm928, %v1095, 0
        %v1102 = vsel %vm928, %v1097, 0
        %1104 = vmatprep.subr.bf16.mxu0 0
        %1105 = vmatpush1.bf16.xpose.msra.mxu0 0
        %1106 = vmatprep.subr.bf16.mxu0 0
        %1107 = vmatpush1.bf16.xpose.msra.mxu0 0
        %1108 = vmatprep.subr.bf16.mxu0 0
        %1109 = vmatpush1.bf16.xpose.msra.mxu0 0
        %1110 = vmatprep.subr.bf16.mxu0 0
        %1111 = vmatpush1.bf16.xpose.msra.mxu0 0
        %1112 = vmatprep.subr.bf16.mxu0 0
        %1113 = vmatpush1.bf16.xpose.msra.mxu0 0
        %1114 = vmatprep.subr.bf16.mxu0 0
        %1115 = vmatpush1.bf16.xpose.msra.mxu0 0
        %1116 = vmatprep.subr.bf16.mxu0 0
        %1117 = vmatpush1.bf16.xpose.msra.mxu0 0
        %1118 = vmatprep.subr.bf16.mxu0 0
        %1119 = vmatpush1.bf16.xpose.msra.mxu0 %v1102
        %1120 = vmatprep.subr.bf16.mxu0 0
        %1121 = vmatpush2.bf16.xpose.msra.mxu0 0
        %1122 = vmatprep.subr.bf16.mxu0 0
        %1123 = vmatpush2.bf16.xpose.msra.mxu0 0
        %1124 = vmatprep.subr.bf16.mxu0 0
        %1125 = vmatpush2.bf16.xpose.msra.mxu0 0
        %1126 = vmatprep.subr.bf16.mxu0 0
        %1127 = vmatpush2.bf16.xpose.msra.mxu0 0
        %1128 = vmatprep.subr.bf16.mxu0 0
        %1129 = vmatpush2.bf16.xpose.msra.mxu0 0
        %1130 = vmatprep.subr.bf16.mxu0 0
        %1131 = vmatpush2.bf16.xpose.msra.mxu0 0
        %1132 = vmatprep.subr.bf16.mxu0 0
        %1133 = vmatpush2.bf16.xpose.msra.mxu0 0
        %1134 = vmatprep.subr.bf16.mxu0 0
        %1135 = vmatpush2.bf16.xpose.msra.mxu0 0
        %1136 = vmatprep.mubr.bf16.mxu0 0
        %1137 = vmatmul.mubr.bf16.gmra.mxu0 %v1099
        %v1138 = vpop.f32.mrf.mxu0
        %v1139 = vadd.f32 0.0, %v1138
        %v1140 = vpop.f32.mrf.mxu0
        %v1141 = vpop.f32.mrf.mxu0
        %v1142 = vpop.f32.mrf.mxu0
        %1143 = vdwg.mxu0
        %v1144 = vxor.u32 %v1139, 2147483648
        %v1145 = vmul.f32 %v1144, 1.442695
        %v1146 = vpow.pop %v1145
        %v1147 = vadd.f32 %v1146, 1.0
        %v1148 = vrcp.pop %v1147
        %v1149 = vmul.f32 1.0, %v1148
        %v1150 = vmul.f32 %v1139, %v1149
        %v1151 = vmul.f32 %v1150, 0.125
        %v1152 = vmul.f32 %v1151, %v618
        %v1153 = vpack.c.bf16 %v1152, %v1152
        %1154 = vrot.lane.b32.xlu0 %v925, 112
        %v1155 = vpop.permute.xlu0 %1154
        %v1157 = vsel %vm623, %v1153, 0
        %v1160 = vsel %vm627, %v1155, 0
        %1162 = vmatprep.subr.bf16.mxu0 0
        %1163 = vmatpush1.bf16.msra.mxu0 0
        %1164 = vmatprep.subr.bf16.mxu0 0
        %1165 = vmatpush1.bf16.msra.mxu0 0
        %1166 = vmatprep.subr.bf16.mxu0 0
        %1167 = vmatpush1.bf16.msra.mxu0 0
        %1168 = vmatprep.subr.bf16.mxu0 0
        %1169 = vmatpush1.bf16.msra.mxu0 0
        %1170 = vmatprep.subr.bf16.mxu0 0
        %1171 = vmatpush1.bf16.msra.mxu0 0
        %1172 = vmatprep.subr.bf16.mxu0 0
        %1173 = vmatpush1.bf16.msra.mxu0 0
        %1174 = vmatprep.subr.bf16.mxu0 0
        %1175 = vmatpush1.bf16.msra.mxu0 0
        %1176 = vmatprep.subr.bf16.mxu0 0
        %1177 = vmatpush1.bf16.msra.mxu0 %v1160
        %1178 = vmatprep.subr.bf16.mxu0 0
        %1179 = vmatpush2.bf16.msra.mxu0 0
        %1180 = vmatprep.subr.bf16.mxu0 0
        %1181 = vmatpush2.bf16.msra.mxu0 0
        %1182 = vmatprep.subr.bf16.mxu0 0
        %1183 = vmatpush2.bf16.msra.mxu0 0
        %1184 = vmatprep.subr.bf16.mxu0 0
        %1185 = vmatpush2.bf16.msra.mxu0 0
        %1186 = vmatprep.subr.bf16.mxu0 0
        %1187 = vmatpush2.bf16.msra.mxu0 0
        %1188 = vmatprep.subr.bf16.mxu0 0
        %1189 = vmatpush2.bf16.msra.mxu0 0
        %1190 = vmatprep.subr.bf16.mxu0 0
        %1191 = vmatpush2.bf16.msra.mxu0 0
        %1192 = vmatprep.subr.bf16.mxu0 0
        %1193 = vmatpush2.bf16.msra.mxu0 0
        %1194 = vmatprep.mubr.bf16.mxu0 0
        %1195 = vmatmul.mubr.bf16.gmra.mxu0 %v1157
        %v1196 = vpop.f32.mrf.mxu0
        %v1197 = vadd.f32 0.0, %v1196
        %v1198 = vpop.f32.mrf.mxu0
        %v1199 = vpop.f32.mrf.mxu0
        %v1200 = vpop.f32.mrf.mxu0
        %1201 = vdwg.mxu0
        %v1202 = vmul.f32 %v1197, %v1197
        %v1203 = vsel %vm928, %v1202, 0.0
        %1204 = vadd.xlane.f32.xlu0 %v1203
        %v1205 = vpop.xlane.xlu0 %1204
        %v1206 = vadd.f32 %v1032, %v1205
        %1208 = vrot.lane.b32.xlu0 %v1197, 80
        %v1209 = vpop.permute.xlu0 %1208
        %v1211 = vmul.f32 %v621, %v1209
        %v1212 = vpack.c.bf16 %v1211, %v1211
        %v1213 = vld [vmem:[%s8 + $0x28] sm:$0xf]
        %v1214 = vld [vmem:[%s8 + $0x2c] sm:$0xf]
        %1216 = vrot.lane.b32.xlu0 %v1212, 48
        %v1217 = vpop.permute.xlu0 %1216
        %v1220 = vunpack.c.l.b16 %v1213
        %v1221 = vunpack.c.l.b16 %v1214
        %v1222 = vpack.c.b16 %v1221, %v1220
        %v1225 = vsel %vm928, %v1217, 0
        %1227 = vmatprep.subr.bf16.mxu0 0
        %1228 = vmatpush1.bf16.msra.mxu0 0
        %1229 = vmatprep.subr.bf16.mxu0 0
        %1230 = vmatpush1.bf16.msra.mxu0 0
        %1231 = vmatprep.subr.bf16.mxu0 0
        %1232 = vmatpush1.bf16.msra.mxu0 0
        %1233 = vmatprep.subr.bf16.mxu0 0
        %1234 = vmatpush1.bf16.msra.mxu0 0
        %1235 = vmatprep.subr.bf16.mxu0 0
        %1236 = vmatpush1.bf16.msra.mxu0 0
        %1237 = vmatprep.subr.bf16.mxu0 0
        %1238 = vmatpush1.bf16.msra.mxu0 0
        %1239 = vmatprep.subr.bf16.mxu0 0
        %1240 = vmatpush1.bf16.msra.mxu0 0
        %1241 = vmatprep.subr.bf16.mxu0 0
        %1242 = vmatpush1.bf16.msra.mxu0 %v1222
        %1243 = vmatprep.subr.bf16.mxu0 0
        %1244 = vmatpush2.bf16.msra.mxu0 0
        %1245 = vmatprep.subr.bf16.mxu0 0
        %1246 = vmatpush2.bf16.msra.mxu0 0
        %1247 = vmatprep.subr.bf16.mxu0 0
        %1248 = vmatpush2.bf16.msra.mxu0 0
        %1249 = vmatprep.subr.bf16.mxu0 0
        %1250 = vmatpush2.bf16.msra.mxu0 0
        %1251 = vmatprep.subr.bf16.mxu0 0
        %1252 = vmatpush2.bf16.msra.mxu0 0
        %1253 = vmatprep.subr.bf16.mxu0 0
        %1254 = vmatpush2.bf16.msra.mxu0 0
        %1255 = vmatprep.subr.bf16.mxu0 0
        %1256 = vmatpush2.bf16.msra.mxu0 0
        %1257 = vmatprep.subr.bf16.mxu0 0
        %1258 = vmatpush2.bf16.msra.mxu0 0
        %1259 = vmatprep.mubr.bf16.mxu0 0
        %1260 = vmatmul.mubr.bf16.gmra.mxu0 %v1225
        %v1261 = vpop.f32.mrf.mxu0
        %v1262 = vadd.f32 0.0, %v1261
        %v1263 = vpop.f32.mrf.mxu0
        %v1264 = vpop.f32.mrf.mxu0
        %v1265 = vpop.f32.mrf.mxu0
        %1266 = vdwg.mxu0
        %v1267 = vadd.f32 %v1093, %v1262
        %v1268 = vmul.f32 %v1206, 0.010416667
        %v1269 = vadd.f32 %v1268, 1e-06
        %v1270 = vrsqrt.pop %v1269
        %v1271 = vmul.f32 %v1270, %v1267
        %v1272 = vld [vmem:[%s9] sm:$0x1]
        %v1274 = vlaneseq
        %v1275 = vshrl.u32 %v1274, 7
        %v1276 = vsub.s32 0, %v1275
        %v1277 = vrot.slane %v1272, %v1276
        %v1279 = vadd.f32 %v1271, %v1277
        %v1280 = vld [vmem:[%s601] sm:$0xf]
        %v1281 = vunpack.c.l.bf16 %v1280
        %v1282 = vadd.f32 %v1279, %v1281
        %v1283 = vmul.f32 %v1282, %v1282
        %v1284 = vsel %vm780, %v1283, 0.0
        %1285 = vadd.xlane.f32.xlu0 %v1284
        %v1286 = vpop.xlane.xlu0 %1285
        %v1287 = vrcp.pop 32.0
        %v1288 = vmul.f32 %v1286, %v1287
        %v1289 = vadd.f32 %v1288, 1e-06
        %v1290 = vrsqrt.pop %v1289
        %v1291 = vmul.f32 %v1282, %v1290
        %v1292 = vpack.c.bf16 %v1291, %v1291
        %v1293 = vld [vmem:[%s10] sm:$0xf]
        %v1294 = vld [vmem:[%s10 + $0x4] sm:$0xf]
        %v1295 = vld [vmem:[%s10 + $0x8] sm:$0xf]
        %v1296 = vld [vmem:[%s10 + $0xc] sm:$0xf]
        %v1301 = vunpack.c.l.b16 %v1293
        %v1302 = vunpack.c.l.b16 %v1294
        %v1303 = vunpack.c.l.b16 %v1295
        %v1304 = vunpack.c.l.b16 %v1296
        %v1305 = vpack.c.b16 %v1302, %v1301
        %v1306 = vpack.c.b16 %v1304, %v1303
        %v1310 = vsel %vm780, %v1292, 0
        %1312 = vmatprep.subr.bf16.mxu0 0
        %1313 = vmatpush1.bf16.msra.mxu0 0
        %1314 = vmatprep.subr.bf16.mxu0 0
        %1315 = vmatpush1.bf16.msra.mxu0 0
        %1316 = vmatprep.subr.bf16.mxu0 0
        %1317 = vmatpush1.bf16.msra.mxu0 0
        %1318 = vmatprep.subr.bf16.mxu0 0
        %1319 = vmatpush1.bf16.msra.mxu0 0
        %1320 = vmatprep.subr.bf16.mxu0 0
        %1321 = vmatpush1.bf16.msra.mxu0 0
        %1322 = vmatprep.subr.bf16.mxu0 0
        %1323 = vmatpush1.bf16.msra.mxu0 0
        %1324 = vmatprep.subr.bf16.mxu0 0
        %1325 = vmatpush1.bf16.msra.mxu0 %v1306
        %1326 = vmatprep.subr.bf16.mxu0 0
        %1327 = vmatpush1.bf16.msra.mxu0 %v1305
        %1328 = vmatprep.subr.bf16.mxu0 0
        %1329 = vmatpush2.bf16.msra.mxu0 0
        %1330 = vmatprep.subr.bf16.mxu0 0
        %1331 = vmatpush2.bf16.msra.mxu0 0
        %1332 = vmatprep.subr.bf16.mxu0 0
        %1333 = vmatpush2.bf16.msra.mxu0 0
        %1334 = vmatprep.subr.bf16.mxu0 0
        %1335 = vmatpush2.bf16.msra.mxu0 0
        %1336 = vmatprep.subr.bf16.mxu0 0
        %1337 = vmatpush2.bf16.msra.mxu0 0
        %1338 = vmatprep.subr.bf16.mxu0 0
        %1339 = vmatpush2.bf16.msra.mxu0 0
        %1340 = vmatprep.subr.bf16.mxu0 0
        %1341 = vmatpush2.bf16.msra.mxu0 0
        %1342 = vmatprep.subr.bf16.mxu0 0
        %1343 = vmatpush2.bf16.msra.mxu0 0
        %1344 = vmatprep.mubr.bf16.mxu0 0
        %1345 = vmatmul.mubr.bf16.gmra.mxu0 %v1310
        %v1346 = vpop.f32.mrf.mxu0
        %v1347 = vadd.f32 0.0, %v1346
        %v1348 = vpop.f32.mrf.mxu0
        %v1349 = vpop.f32.mrf.mxu0
        %v1350 = vpop.f32.mrf.mxu0
        %1351 = vdwg.mxu0
        %v1352 = vld [vmem:[%s11] sm:$0xf]
        %v1353 = vld [vmem:[%s11 + $0x4] sm:$0xf]
        %v1354 = vld [vmem:[%s11 + $0x8] sm:$0xf]
        %v1355 = vld [vmem:[%s11 + $0xc] sm:$0xf]
        %v1360 = vunpack.c.l.b16 %v1352
        %v1361 = vunpack.c.l.b16 %v1353
        %v1362 = vunpack.c.l.b16 %v1354
        %v1363 = vunpack.c.l.b16 %v1355
        %v1364 = vpack.c.b16 %v1361, %v1360
        %v1365 = vpack.c.b16 %v1363, %v1362
        %1368 = vmatprep.subr.bf16.mxu0 0
        %1369 = vmatpush1.bf16.msra.mxu0 0
        %1370 = vmatprep.subr.bf16.mxu0 0
        %1371 = vmatpush1.bf16.msra.mxu0 0
        %1372 = vmatprep.subr.bf16.mxu0 0
        %1373 = vmatpush1.bf16.msra.mxu0 0
        %1374 = vmatprep.subr.bf16.mxu0 0
        %1375 = vmatpush1.bf16.msra.mxu0 0
        %1376 = vmatprep.subr.bf16.mxu0 0
        %1377 = vmatpush1.bf16.msra.mxu0 0
        %1378 = vmatprep.subr.bf16.mxu0 0
        %1379 = vmatpush1.bf16.msra.mxu0 0
        %1380 = vmatprep.subr.bf16.mxu0 0
        %1381 = vmatpush1.bf16.msra.mxu0 %v1365
        %1382 = vmatprep.subr.bf16.mxu0 0
        %1383 = vmatpush1.bf16.msra.mxu0 %v1364
        %1384 = vmatprep.subr.bf16.mxu0 0
        %1385 = vmatpush2.bf16.msra.mxu0 0
        %1386 = vmatprep.subr.bf16.mxu0 0
        %1387 = vmatpush2.bf16.msra.mxu0 0
        %1388 = vmatprep.subr.bf16.mxu0 0
        %1389 = vmatpush2.bf16.msra.mxu0 0
        %1390 = vmatprep.subr.bf16.mxu0 0
        %1391 = vmatpush2.bf16.msra.mxu0 0
        %1392 = vmatprep.subr.bf16.mxu0 0
        %1393 = vmatpush2.bf16.msra.mxu0 0
        %1394 = vmatprep.subr.bf16.mxu0 0
        %1395 = vmatpush2.bf16.msra.mxu0 0
        %1396 = vmatprep.subr.bf16.mxu0 0
        %1397 = vmatpush2.bf16.msra.mxu0 0
        %1398 = vmatprep.subr.bf16.mxu0 0
        %1399 = vmatpush2.bf16.msra.mxu0 0
        %1400 = vmatprep.mubr.bf16.mxu0 0
        %1401 = vmatmul.mubr.bf16.gmra.mxu0 %v1310
        %v1402 = vpop.f32.mrf.mxu0
        %v1403 = vadd.f32 0.0, %v1402
        %v1404 = vpop.f32.mrf.mxu0
        %v1405 = vpop.f32.mrf.mxu0
        %v1406 = vpop.f32.mrf.mxu0
        %1407 = vdwg.mxu0
        %v1408 = vxor.u32 %v1347, 2147483648
        %v1409 = vmul.f32 %v1408, 1.442695
        %v1410 = vpow.pop %v1409
        %v1411 = vadd.f32 %v1410, 1.0
        %v1412 = vrcp.pop %v1411
        %v1413 = vmul.f32 1.0, %v1412
        %v1414 = vmul.f32 %v1347, %v1413
        %v1415 = vmul.f32 %v1414, %v1403
        %v1416 = vpack.c.bf16 %v1415, %v1415
        %v1417 = vld [vmem:[%s12] sm:$0xf]
        %v1418 = vld [vmem:[%s12 + $0x4] sm:$0xf]
        %v1419 = vld [vmem:[%s12 + $0x8] sm:$0xf]
        %v1420 = vld [vmem:[%s12 + $0xc] sm:$0xf]
        %v1425 = vunpack.c.l.b16 %v1417
        %v1426 = vunpack.c.l.b16 %v1418
        %v1427 = vunpack.c.l.b16 %v1419
        %v1428 = vunpack.c.l.b16 %v1420
        %v1429 = vpack.c.b16 %v1426, %v1425
        %v1430 = vpack.c.b16 %v1428, %v1427
        %v1434 = vsel %vm780, %v1416, 0
        %1436 = vmatprep.subr.bf16.mxu0 0
        %1437 = vmatpush1.bf16.msra.mxu0 0
        %1438 = vmatprep.subr.bf16.mxu0 0
        %1439 = vmatpush1.bf16.msra.mxu0 0
        %1440 = vmatprep.subr.bf16.mxu0 0
        %1441 = vmatpush1.bf16.msra.mxu0 0
        %1442 = vmatprep.subr.bf16.mxu0 0
        %1443 = vmatpush1.bf16.msra.mxu0 0
        %1444 = vmatprep.subr.bf16.mxu0 0
        %1445 = vmatpush1.bf16.msra.mxu0 0
        %1446 = vmatprep.subr.bf16.mxu0 0
        %1447 = vmatpush1.bf16.msra.mxu0 0
        %1448 = vmatprep.subr.bf16.mxu0 0
        %1449 = vmatpush1.bf16.msra.mxu0 %v1430
        %1450 = vmatprep.subr.bf16.mxu0 0
        %1451 = vmatpush1.bf16.msra.mxu0 %v1429
        %1452 = vmatprep.subr.bf16.mxu0 0
        %1453 = vmatpush2.bf16.msra.mxu0 0
        %1454 = vmatprep.subr.bf16.mxu0 0
        %1455 = vmatpush2.bf16.msra.mxu0 0
        %1456 = vmatprep.subr.bf16.mxu0 0
        %1457 = vmatpush2.bf16.msra.mxu0 0
        %1458 = vmatprep.subr.bf16.mxu0 0
        %1459 = vmatpush2.bf16.msra.mxu0 0
        %1460 = vmatprep.subr.bf16.mxu0 0
        %1461 = vmatpush2.bf16.msra.mxu0 0
        %1462 = vmatprep.subr.bf16.mxu0 0
        %1463 = vmatpush2.bf16.msra.mxu0 0
        %1464 = vmatprep.subr.bf16.mxu0 0
        %1465 = vmatpush2.bf16.msra.mxu0 0
        %1466 = vmatprep.subr.bf16.mxu0 0
        %1467 = vmatpush2.bf16.msra.mxu0 0
        %1468 = vmatprep.mubr.bf16.mxu0 0
        %1469 = vmatmul.mubr.bf16.gmra.mxu0 %v1434
        %v1470 = vpop.f32.mrf.mxu0
        %v1471 = vadd.f32 %v1282, %v1470
        %v1472 = vpop.f32.mrf.mxu0
        %v1473 = vpop.f32.mrf.mxu0
        %v1474 = vpop.f32.mrf.mxu0
        %1475 = vdwg.mxu0
        %v1476 = vld [vmem:[%s608] sm:$0xff]
        %1478 = vset.pattern.permute.xlu0 0
        %1479 = vperm.xlu0 %1478, %v1476
        %v1480 = vpop.permute.xlu0 %1479
        %v1482 = vmul.f32 %v1471, %v1480
        %v1483 = vpack.c.bf16 %v1482, %v1482
        %vm1484 = vcmask 257024
        %1485 = vst.msk [vmem:[%s615] sm:$0xf] %vm1484, %v1483
        %p1486 = scmp.lt.s32.totalorder %s30, 1
        %s1487 = scalar_select %p1486, %s30, 1
        %p1488 = scmp.lt.s32.totalorder %s29, 0
        %s1489 = scalar_select %p1488, %s29, 0
        %s1490 = sadd.s32 %s1489, %s1487
        %s1491 = smul.addr %s1490, 4
        %s1492 = scalar_lea.vmem %s13, %s1491
        // Predicated region
        $region77: #{fuxi_jagged_forward.5} parent=71 // pred_check
          %p1493 = pneg %p373
        $region78: #{fuxi_jagged_forward.5} parent=71 // pred_check_branch
          %1495 = sbr.rel (%p1493) target = $region80
        $region79: #{fuxi_jagged_forward.5} parent=71 // pred_region
          _
        $region80: #{fuxi_jagged_forward.5} parent=71 // pred_fallthru
          _
      $region72: #{fuxi_jagged_forward.5} parent=5 // pred_fallthru
        _
      %p1496 = scmp.le.s32.totalorder 2, %s20
      // Predicated region
      $region81: #{fuxi_jagged_forward.5} parent=5 // pred_check
        %p1497 = pneg %p1496
      $region82: #{fuxi_jagged_forward.5} parent=5 // pred_check_branch
        %1499 = sbr.rel (%p1497) target = $region84
      $region83: #{fuxi_jagged_forward.5} parent=5 // pred_region
        %s1500 = ssub.s32 %s20, 2
        // Predicated region
        $region85: #{fuxi_jagged_forward.5} parent=83 // pred_check
          %p1501 = pneg %p379
        $region86: #{fuxi_jagged_forward.5} parent=83 // pred_check_branch
          %1503 = sbr.rel (%p1501) target = $region88
        $region87: #{fuxi_jagged_forward.5} parent=83 // pred_region
          %p1504 = scmp.lt.s32.totalorder %s32, 1
          %s1505 = scalar_select %p1504, %s32, 1
          %p1506 = scmp.lt.s32.totalorder %s31, 0
          %s1507 = scalar_select %p1506, %s31, 0
          %s1508 = sadd.s32 %s1507, %s1505
          %s1509 = smul.addr %s1508, 4
          %s1510 = scalar_lea.vmem %s13, %s1509
        $region88: #{fuxi_jagged_forward.5} parent=83 // pred_fallthru
          _
      $region84: #{fuxi_jagged_forward.5} parent=5 // pred_fallthru
        _
    $region6: #{fuxi_jagged_forward.5} parent=1 // loop_footer
      %s24 = sadd.s32 1, %s20
    $region7: #{fuxi_jagged_forward.5} parent=1 // loop_footer_branch
      %19 = sbr.rel target = $region3
    $region8: #{fuxi_jagged_forward.5} parent=1 // loop_exit
      _
    %1511 = vsyncpa [#allocation3], 1
    %s1512 = scalar_lea.sflag [#allocation3], 1
    %1513 = vsyncpa %s1512, 1

</llo_original>
